<compile_context>
chip_gen: v6e
topology: v6e:2x2x1
jax: 0.10.0
libtpu: 0.0.40
codegen_flags: <defaults>
</compile_context>

<pallas_src>
import jax
import jax.numpy as jnp
from jax.experimental import pallas as pl
from jax.experimental.pallas import tpu as pltpu


def sage_kernel(adj_ref, feat_src_ref, feat_dst_ref, inv_deg_ref,
                w_self_ref, bias_ref, out_ref, acc_ref):
    k = pl.program_id(1)

    @pl.when(k == 0)
    def _init():
        acc_ref[...] = jnp.zeros_like(acc_ref)

    # Neighbor-sum accumulate: (TM, TK) bf16 adj tile x (TK, D) bf16 source-feature
    # tile, accumulated in f32 on the MXU (single-pass bf16 path).
    acc_ref[...] += jnp.dot(adj_ref[...], feat_src_ref[...],
                            preferred_element_type=jnp.float32)

    @pl.when(k == pl.num_programs(1) - 1)
    def _finalize():
        # Mean normalization (inv_deg == 0 for isolated nodes), self transform and
        # bias are applied exactly once per dst tile in the epilogue.
        h_neigh = acc_ref[...] * inv_deg_ref[...]
        h_self = jnp.dot(feat_dst_ref[...], w_self_ref[...],
                         preferred_element_type=jnp.float32)
        out_ref[...] = (h_self + bias_ref[...] + h_neigh).astype(out_ref.dtype)


def prepare_graph(adj):
    """One-time graph preprocessing (hoisted out of the forward hot path).

    Returns (adj_bf16, inv_deg):
      adj_bf16: (N_dst, N_src) bf16 0/1 adjacency (exact; halves HBM traffic of the
                dominant O(N^2) operand).
      inv_deg : (N_dst, 1) f32 inverse in-degree (0 for isolated nodes); degree is
                counted in f32 so integer counts stay exact.
    """
    deg = jnp.sum(adj.astype(jnp.float32), axis=1, keepdims=True)          # (N, 1)
    inv_deg = jnp.where(deg > 0.0, 1.0 / jnp.where(deg > 0.0, deg, 1.0), 0.0)
    return adj.astype(jnp.bfloat16), inv_deg


def _vmem_limit_bytes(tm, tk, d_in, d_out):
    """Tile footprint estimate -> explicit scoped-VMEM limit (generation-safe)."""
    need = (2 * tm * tk * 2          # adj, double-buffered bf16
            + 2 * tk * d_in * 2      # feat_src, double-buffered bf16
            + 1 * tm * d_in * 2      # feat_dst, single-buffered bf16
            + 1 * tm * 4             # inv_deg, single-buffered f32
            + 1 * d_in * d_out * 2   # w_self, resident bf16
            + 1 * d_out * 4          # bias, resident f32
            + 2 * tm * d_out * 4     # out, double-buffered f32
            + 1 * tm * d_out * 4)    # acc scratch f32
    # Floor at 32 MiB (>= v5e's 16 MiB default, == v6e/v7x default), cap at 48 MiB so
    # the same setting stays inside v7x's 64 MiB physical VMEM.
    return max(32 << 20, min(need + (8 << 20), 48 << 20))


def sage_conv_forward(adj_bf16, inv_deg, feat_bf16, w_self_t_bf16, bias,
                      *, tm=512, tk=2048):
    """Forward pass.

    adj_bf16:      (N_dst, N_src) bf16 {0,1} adjacency (from prepare_graph).
    inv_deg:       (N_dst, 1) f32 inverse in-degree (from prepare_graph).
    feat_bf16:     (N, D) bf16 node features.
    w_self_t_bf16: (D, D_out) bf16 fc_self weight, stored transposed.
    bias:          (1, D_out) f32 fc_self bias.
    """
    n_dst, n_src = adj_bf16.shape
    n, d_in = feat_bf16.shape
    d_out = w_self_t_bf16.shape[1]
    assert n_dst == n and n_src == n, "square homogeneous-graph adjacency expected"
    # This forward adds fc_self(feat) directly to h_neigh (fc_neigh is never applied),
    # so the feature dims must match.
    assert d_in == d_out, "this SAGEConv forward requires in_feats == out_feats"

    tm = min(tm, n_dst)
    tk = min(tk, n_src)
    # TODO(synk): no ragged-edge masking path; production would pad N to the tiles.
    assert n_dst % tm == 0 and n_src % tk == 0, "N must be divisible by the tile sizes"

    grid = (n_dst // tm, n_src // tk)
    return pl.pallas_call(
        sage_kernel,
        out_shape=jax.ShapeDtypeStruct((n_dst, d_out), jnp.float32),
        grid_spec=pltpu.PrefetchScalarGridSpec(
            num_scalar_prefetch=0,
            grid=grid,
            in_specs=[
                # adj tile (dst x src): streamed over both grid axes.
                pl.BlockSpec((tm, tk), lambda i, k: (i, k)),
                # feat, source rows: streamed over k.
                pl.BlockSpec((tk, d_in), lambda i, k: (k, 0)),
                # k-invariant operands: single-buffered to save VMEM headroom.
                pl.BlockSpec((tm, d_in), lambda i, k: (i, 0),
                             pipeline_mode=pl.Buffered(1)),     # feat, dst rows
                pl.BlockSpec((tm, 1), lambda i, k: (i, 0),
                             pipeline_mode=pl.Buffered(1)),     # inverse in-degree
                pl.BlockSpec((d_in, d_out), lambda i, k: (0, 0),
                             pipeline_mode=pl.Buffered(1)),     # fc_self weight
                pl.BlockSpec((1, d_out), lambda i, k: (0, 0),
                             pipeline_mode=pl.Buffered(1)),     # bias
            ],
            out_specs=pl.BlockSpec((tm, d_out), lambda i, k: (i, 0)),
            scratch_shapes=[pltpu.VMEM((tm, d_out), jnp.float32)],
        ),
        compiler_params=pltpu.CompilerParams(
            dimension_semantics=("parallel", "arbitrary"),
            vmem_limit_bytes=_vmem_limit_bytes(tm, tk, d_in, d_out)),
    )(adj_bf16, feat_bf16, feat_bf16, inv_deg, w_self_t_bf16, bias)


def init_params(key, in_feats, out_feats):
    """Deterministic synthetic init mirroring reset_parameters():
    fc_self.weight: xavier_uniform with gain=sqrt(2); fc_self.bias: Linear default."""
    k_w, k_b = jax.random.split(key)
    gain = jnp.sqrt(2.0)                       # calculate_gain('relu')
    bound_w = gain * jnp.sqrt(6.0 / (in_feats + out_feats))
    # torch Linear weight is (out, in); store transposed (in, out) for row-major matmul.
    w_self_t = jax.random.uniform(k_w, (in_feats, out_feats), jnp.float32,
                                  minval=-bound_w, maxval=bound_w)
    bound_b = 1.0 / jnp.sqrt(float(in_feats))
    bias = jax.random.uniform(k_b, (1, out_feats), jnp.float32,
                              minval=-bound_b, maxval=bound_b)
    # TODO(synk): fc_neigh weight exists in __init__ but this module's forward never
    # applies it, so it is intentionally not materialized here.
    return w_self_t, bias


if __name__ == "__main__":
    key = jax.random.PRNGKey(0)
    k_adj, k_feat, k_param = jax.random.split(key, 3)

    N = 512           # number of graph nodes -> grid collapses to a single (1, 1) step
    D = 128           # in_feats == out_feats; lane-dense output (multiple of 128)

    # Random directed graph as a dense adjacency (dst x src), ~30% edge density.
    adj = (jax.random.uniform(k_adj, (N, N)) < 0.3).astype(jnp.float32)
    feat = jax.random.normal(k_feat, (N, D), dtype=jnp.float32)

    w_self_t, bias = init_params(k_param, D, D)

    # One-time preprocessing (hoisted out of the hot path) + bf16 operand casts.
    adj_bf16, inv_deg = prepare_graph(adj)
    feat_bf16 = feat.astype(jnp.bfloat16)
    w_self_t_bf16 = w_self_t.astype(jnp.bfloat16)

    out = sage_conv_forward(adj_bf16, inv_deg, feat_bf16, w_self_t_bf16, bias)
    out = jax.block_until_ready(out)

    # Pure-JAX reference of the same semantics, computed from the same bf16-quantized
    # operands (full-precision matmuls), so the kernel's bf16 MXU path matches closely.
    adj_f32 = adj_bf16.astype(jnp.float32)
    feat_q = feat_bf16.astype(jnp.float32)
    w_q = w_self_t_bf16.astype(jnp.float32)
    h_neigh_ref = jnp.dot(adj_f32, feat_q,
                          precision=jax.lax.Precision.HIGHEST) * inv_deg
    h_self_ref = jnp.dot(feat_q, w_q, precision=jax.lax.Precision.HIGHEST)
    ref = h_self_ref + bias + h_neigh_ref

    assert out.shape == (N, D)
    assert jnp.allclose(out, ref, atol=2e-2, rtol=2e-2)

    print("KERNEL_OK")
</pallas_src>

<mosaic_0001>
module attributes {stable_mosaic.version = 11 : i64} {
  func.func @sage_kernel(%arg0: i32, %arg1: i32, %arg2: memref<512x512xbf16, #tpu.memory_space<vmem>>, %arg3: memref<512x128xbf16, #tpu.memory_space<vmem>>, %arg4: memref<512x128xbf16, #tpu.memory_space<vmem>>, %arg5: memref<512x1xf32, #tpu.memory_space<vmem>>, %arg6: memref<128x128xbf16, #tpu.memory_space<vmem>>, %arg7: memref<1x128xf32, #tpu.memory_space<vmem>>, %arg8: memref<512x128xf32, #tpu.memory_space<vmem>>, %arg9: memref<512x128xf32, #tpu.memory_space<vmem>>) attributes {dimension_semantics = [#tpu.dimension_semantics<parallel>, #tpu.dimension_semantics<arbitrary>], iteration_bounds = array<i64: 1, 1>, scalar_prefetch = 0 : i64, scratch_operands = 1 : i64, tpu.core_type = #tpu.core_type<tc>, window_params = [{transform_indices = @transform_0, window_bounds = array<i64: 512, 512>}, {transform_indices = @transform_1, window_bounds = array<i64: 512, 128>}, {pipeline_mode = #tpu.pipeline_mode<synchronous>, transform_indices = @transform_2, window_bounds = array<i64: 512, 128>}, {pipeline_mode = #tpu.pipeline_mode<synchronous>, transform_indices = @transform_3, window_bounds = array<i64: 512, 1>}, {pipeline_mode = #tpu.pipeline_mode<synchronous>, transform_indices = @transform_4, window_bounds = array<i64: 128, 128>}, {pipeline_mode = #tpu.pipeline_mode<synchronous>, transform_indices = @transform_5, window_bounds = array<i64: 1, 128>}, {transform_indices = @transform_6, window_bounds = array<i64: 512, 128>}]} {
    %c0_i32 = arith.constant 0 : i32
    %0 = arith.cmpi eq, %arg1, %c0_i32 : i32
    %1 = arith.extui %0 : i1 to i32
    %c0_i32_0 = arith.constant 0 : i32
    %2 = arith.cmpi ne, %1, %c0_i32_0 : i32
    scf.if %2 {
      %cst_10 = arith.constant 0.000000e+00 : f32
      %12 = vector.broadcast %cst_10 : f32 to vector<512x128xf32>
      %c0_11 = arith.constant 0 : index
      %c0_12 = arith.constant 0 : index
      %13 = vector.load %arg9[%c0_11, %c0_12] : memref<512x128xf32, #tpu.memory_space<vmem>>, vector<512x128xf32>
      tpu.vector_store %arg9[%c0_11, %c0_12], %12 {strides = array<i32>} : memref<512x128xf32, #tpu.memory_space<vmem>>, vector<512x128xf32>,
    } else {
    }
    %c0 = arith.constant 0 : index
    %c0_1 = arith.constant 0 : index
    %3 = vector.load %arg9[%c0, %c0_1] : memref<512x128xf32, #tpu.memory_space<vmem>>, vector<512x128xf32>
    %c0_2 = arith.constant 0 : index
    %c0_3 = arith.constant 0 : index
    %4 = vector.load %arg2[%c0_2, %c0_3] : memref<512x512xbf16, #tpu.memory_space<vmem>>, vector<512x512xbf16>
    %c0_4 = arith.constant 0 : index
    %c0_5 = arith.constant 0 : index
    %5 = vector.load %arg3[%c0_4, %c0_5] : memref<512x128xbf16, #tpu.memory_space<vmem>>, vector<512x128xbf16>
    %cst = arith.constant dense<0.000000e+00> : vector<512x128xf32>
    %6 = tpu.matmul %4, %5, %cst {dimension_numbers = #tpu.dot_dimension_numbers<[1], [0], [0], [1], [0, 0, 1, 1], [], []>} : vector<512x512xbf16>, vector<512x128xbf16>, vector<512x128xf32> -> vector<512x128xf32>
    %7 = arith.addf %3, %6 : vector<512x128xf32>
    %c0_6 = arith.constant 0 : index
    %c0_7 = arith.constant 0 : index
    %8 = vector.load %arg9[%c0_6, %c0_7] : memref<512x128xf32, #tpu.memory_space<vmem>>, vector<512x128xf32>
    tpu.vector_store %arg9[%c0_6, %c0_7], %7 {strides = array<i32>} : memref<512x128xf32, #tpu.memory_space<vmem>>, vector<512x128xf32>,
    %c0_i32_8 = arith.constant 0 : i32
    %9 = arith.cmpi eq, %arg1, %c0_i32_8 : i32
    %10 = arith.extui %9 : i1 to i32
    %c0_i32_9 = arith.constant 0 : i32
    %11 = arith.cmpi ne, %10, %c0_i32_9 : i32
    scf.if %11 {
      %c0_10 = arith.constant 0 : index
      %c0_11 = arith.constant 0 : index
      %12 = vector.load %arg9[%c0_10, %c0_11] : memref<512x128xf32, #tpu.memory_space<vmem>>, vector<512x128xf32>
      %c0_12 = arith.constant 0 : index
      %c0_13 = arith.constant 0 : index
      %13 = vector.load %arg5[%c0_12, %c0_13] : memref<512x1xf32, #tpu.memory_space<vmem>>, vector<512x1xf32>
      %14 = vector.broadcast %13 : vector<512x1xf32> to vector<512x128xf32>
      %15 = arith.mulf %12, %14 : vector<512x128xf32>
      %c0_14 = arith.constant 0 : index
      %c0_15 = arith.constant 0 : index
      %16 = vector.load %arg4[%c0_14, %c0_15] : memref<512x128xbf16, #tpu.memory_space<vmem>>, vector<512x128xbf16>
      %c0_16 = arith.constant 0 : index
      %c0_17 = arith.constant 0 : index
      %17 = vector.load %arg6[%c0_16, %c0_17] : memref<128x128xbf16, #tpu.memory_space<vmem>>, vector<128x128xbf16>
      %cst_18 = arith.constant dense<0.000000e+00> : vector<512x128xf32>
      %18 = tpu.matmul %16, %17, %cst_18 {dimension_numbers = #tpu.dot_dimension_numbers<[1], [0], [0], [1], [0, 0, 1, 1], [], []>} : vector<512x128xbf16>, vector<128x128xbf16>, vector<512x128xf32> -> vector<512x128xf32>
      %c0_19 = arith.constant 0 : index
      %c0_20 = arith.constant 0 : index
      %19 = vector.load %arg7[%c0_19, %c0_20] : memref<1x128xf32, #tpu.memory_space<vmem>>, vector<1x128xf32>
      %20 = vector.broadcast %19 : vector<1x128xf32> to vector<512x128xf32>
      %21 = arith.addf %18, %20 : vector<512x128xf32>
      %22 = arith.addf %21, %15 : vector<512x128xf32>
      %c0_21 = arith.constant 0 : index
      %c0_22 = arith.constant 0 : index
      %23 = vector.load %arg8[%c0_21, %c0_22] : memref<512x128xf32, #tpu.memory_space<vmem>>, vector<512x128xf32>
      tpu.vector_store %arg8[%c0_21, %c0_22], %22 {strides = array<i32>} : memref<512x128xf32, #tpu.memory_space<vmem>>, vector<512x128xf32>,
    } else {
    }
    return
  }
  func.func @transform_0(%arg0: i32, %arg1: i32) -> (i32, i32) {
    %c0_i32 = arith.constant 0 : i32
    return %arg0, %arg1 : i32, i32
  }
  func.func @transform_1(%arg0: i32, %arg1: i32) -> (i32, i32) {
    %c0_i32 = arith.constant 0 : i32
    %c0_i32_0 = arith.constant 0 : i32
    return %arg1, %c0_i32 : i32, i32
  }
  func.func @transform_2(%arg0: i32, %arg1: i32) -> (i32, i32) {
    %c0_i32 = arith.constant 0 : i32
    %c0_i32_0 = arith.constant 0 : i32
    return %arg0, %c0_i32 : i32, i32
  }
  func.func @transform_3(%arg0: i32, %arg1: i32) -> (i32, i32) {
    %c0_i32 = arith.constant 0 : i32
    %c0_i32_0 = arith.constant 0 : i32
    return %arg0, %c0_i32 : i32, i32
  }
  func.func @transform_4(%arg0: i32, %arg1: i32) -> (i32, i32) {
    %c0_i32 = arith.constant 0 : i32
    %c0_i32_0 = arith.constant 0 : i32
    %c0_i32_1 = arith.constant 0 : i32
    return %c0_i32, %c0_i32_0 : i32, i32
  }
  func.func @transform_5(%arg0: i32, %arg1: i32) -> (i32, i32) {
    %c0_i32 = arith.constant 0 : i32
    %c0_i32_0 = arith.constant 0 : i32
    %c0_i32_1 = arith.constant 0 : i32
    return %c0_i32, %c0_i32_0 : i32, i32
  }
  func.func @transform_6(%arg0: i32, %arg1: i32) -> (i32, i32) {
    %c0_i32 = arith.constant 0 : i32
    %c0_i32_0 = arith.constant 0 : i32
    return %arg0, %c0_i32 : i32, i32
  }
}

</mosaic_0001>

<llo_original>
// kernel: tpu_custom_call.1
$region0: #{tpu_custom_call.1}
  #allocation0 [shape = 'u32[]', space=smem, size = 0x4, offset = 0x4, fixed_abs, tag = 'smem constant byte address 0x4 - core index']
  #allocation1 [shape = 'u32[144,128]{1,0:T(1,128)}', space=vmem, size = 0x12000, scoped, tag = 'internal scratch']
  #allocation2 [shape = 'f32[512,128]{1,0:T(8,128)}', space=vmem, size = 0x40000, scoped, tag = 'scratch operand']
  %s0 = inlined_call_operand.hbm [shape: bf16[512,512], index: 0, kind: input, shape index: {}]
  %s1 = inlined_call_operand.vmem [shape: bf16[512,128], index: 1, kind: input, shape index: {}]
  %s2 = inlined_call_operand.vmem [shape: bf16[512,128], index: 2, kind: input, shape index: {}]
  %s3 = inlined_call_operand.vmem [shape: f32[512,1], index: 3, kind: input, shape index: {}]
  %s4 = inlined_call_operand.hbm [shape: bf16[128,128], index: 4, kind: input, shape index: {}]
  %s5 = inlined_call_operand.vmem [shape: f32[1,128], index: 5, kind: input, shape index: {}]
  %s6 = inlined_call_operand.hbm [shape: f32[512,128], index: 6, kind: output, shape index: {}]
  %s7 = sld [smem:[#allocation0]]
  $region50: #{tpu_custom_call.1} parent=0
    _
  %s9 = ssub.s32 1, %s7
  %s10 = scalar_select 0, %s9, %s7
  $region1: #{tpu_custom_call.1} parent=0
    #allocation3 [shape = 'u8[524288]{0}', space=vmem, size = 0x80000, scoped, tag = 'input window, operand 0, single buffered']
    #allocation4 [shape = 's32[1]{0}', space=sflag, size = 0x4, scoped, tag = 'scoped memory for tpu_custom_call.1']
    #allocation5 [shape = 's32[1]{0}', space=sflag, size = 0x4, scoped, tag = 'scoped memory for tpu_custom_call.1']
    #allocation6 [shape = 'u8[32768]{0}', space=vmem, size = 0x8000, scoped, tag = 'input window, operand 4, single buffered']
    #allocation7 [shape = 's32[1]{0}', space=sflag, size = 0x4, scoped, tag = 'scoped memory for tpu_custom_call.1']
    #allocation8 [shape = 'u8[262144]{0}', space=vmem, size = 0x40000, scoped, tag = 'output window, operand 0, single buffered']
    %11 = vsyncpa [#allocation4], 0
    %12 = vsyncpa [#allocation7], 0
    %13 = vsyncpa [#allocation5], 0
    // Predicated region
    $region2: #{tpu_custom_call.1} parent=1 // pred_check
      _
    $region3: #{tpu_custom_call.1} parent=1 // pred_check_branch
      %15 = sbr.rel (0) target = $region5
    $region4: #{tpu_custom_call.1} parent=1 // pred_region
      %s17 = ssub.s32 16384, 16384
      %18 = vsyncadd [#allocation4], %s17
      %s19 = sshll.u32 [#allocation3], 4
      %s20 = int_to_ptr.vmem [resolvable:$true] %s19
      %25 = dma.hbm_to_vmem [thread:$0]  %s0, 16384, %s20, [#allocation4], 256, 256, 16
    $region5: #{tpu_custom_call.1} parent=1 // pred_fallthru
      _
    // Predicated region
    $region6: #{tpu_custom_call.1} parent=1 // pred_check
      _
    $region7: #{tpu_custom_call.1} parent=1 // pred_check_branch
      %27 = sbr.rel (0) target = $region9
    $region8: #{tpu_custom_call.1} parent=1 // pred_region
      _
    $region9: #{tpu_custom_call.1} parent=1 // pred_fallthru
      _
    // Predicated region
    $region10: #{tpu_custom_call.1} parent=1 // pred_check
      _
    $region11: #{tpu_custom_call.1} parent=1 // pred_check_branch
      %29 = sbr.rel (0) target = $region13
    $region12: #{tpu_custom_call.1} parent=1 // pred_region
      _
    $region13: #{tpu_custom_call.1} parent=1 // pred_fallthru
      _
    // Predicated region
    $region14: #{tpu_custom_call.1} parent=1 // pred_check
      _
    $region15: #{tpu_custom_call.1} parent=1 // pred_check_branch
      %31 = sbr.rel (0) target = $region17
    $region16: #{tpu_custom_call.1} parent=1 // pred_region
      _
    $region17: #{tpu_custom_call.1} parent=1 // pred_fallthru
      _
    // Predicated region
    $region18: #{tpu_custom_call.1} parent=1 // pred_check
      _
    $region19: #{tpu_custom_call.1} parent=1 // pred_check_branch
      %33 = sbr.rel (0) target = $region21
    $region20: #{tpu_custom_call.1} parent=1 // pred_region
      %s35 = ssub.s32 1024, 1024
      %36 = vsyncadd [#allocation7], %s35
      %s37 = sshll.u32 [#allocation6], 4
      %s38 = int_to_ptr.vmem [resolvable:$true] %s37
      %43 = dma.hbm_to_vmem [thread:$0]  %s4, 1024, %s38, [#allocation7], 64, 64, 4
    $region21: #{tpu_custom_call.1} parent=1 // pred_fallthru
      _
    // Predicated region
    $region22: #{tpu_custom_call.1} parent=1 // pred_check
      _
    $region23: #{tpu_custom_call.1} parent=1 // pred_check_branch
      %45 = sbr.rel (0) target = $region25
    $region24: #{tpu_custom_call.1} parent=1 // pred_region
      _
    $region25: #{tpu_custom_call.1} parent=1 // pred_fallthru
      _
    // Predicated region
    $region26: #{tpu_custom_call.1} parent=1 // pred_check
      _
    $region27: #{tpu_custom_call.1} parent=1 // pred_check_branch
      %47 = sbr.rel (0) target = $region29
    $region28: #{tpu_custom_call.1} parent=1 // pred_region
      %48 = dma.done [#allocation4], 16384
    $region29: #{tpu_custom_call.1} parent=1 // pred_fallthru
      _
    // Predicated region
    $region30: #{tpu_custom_call.1} parent=1 // pred_check
      _
    $region31: #{tpu_custom_call.1} parent=1 // pred_check_branch
      %50 = sbr.rel (0) target = $region33
    $region32: #{tpu_custom_call.1} parent=1 // pred_region
      %51 = dma.done [#allocation7], 1024
    $region33: #{tpu_custom_call.1} parent=1 // pred_fallthru
      _
    %p53 = scmp.eq.s32.totalorder 0, 0
    // Predicated region
    $region34: #{tpu_custom_call.1} parent=1 // pred_check
      %p54 = pneg %p53
    $region35: #{tpu_custom_call.1} parent=1 // pred_check_branch
      %56 = sbr.rel (%p54) target = $region37
    $region36: #{tpu_custom_call.1} parent=1 // pred_region
      %57 = vst [vmem:[#allocation2] sm:$0xff] 0.0
      %58 = vst [vmem:[#allocation2 + $0x8] sm:$0xff] 0.0
      %59 = vst [vmem:[#allocation2 + $0x10] sm:$0xff] 0.0
      %60 = vst [vmem:[#allocation2 + $0x18] sm:$0xff] 0.0
      %61 = vst [vmem:[#allocation2 + $0x20] sm:$0xff] 0.0
      %62 = vst [vmem:[#allocation2 + $0x28] sm:$0xff] 0.0
      %63 = vst [vmem:[#allocation2 + $0x30] sm:$0xff] 0.0
      %64 = vst [vmem:[#allocation2 + $0x38] sm:$0xff] 0.0
      %65 = vst [vmem:[#allocation2 + $0x40] sm:$0xff] 0.0
      %66 = vst [vmem:[#allocation2 + $0x48] sm:$0xff] 0.0
      %67 = vst [vmem:[#allocation2 + $0x50] sm:$0xff] 0.0
      %68 = vst [vmem:[#allocation2 + $0x58] sm:$0xff] 0.0
      %69 = vst [vmem:[#allocation2 + $0x60] sm:$0xff] 0.0
      %70 = vst [vmem:[#allocation2 + $0x68] sm:$0xff] 0.0
      %71 = vst [vmem:[#allocation2 + $0x70] sm:$0xff] 0.0
      %72 = vst [vmem:[#allocation2 + $0x78] sm:$0xff] 0.0
      %73 = vst [vmem:[#allocation2 + $0x80] sm:$0xff] 0.0
      %74 = vst [vmem:[#allocation2 + $0x88] sm:$0xff] 0.0
      %75 = vst [vmem:[#allocation2 + $0x90] sm:$0xff] 0.0
      %76 = vst [vmem:[#allocation2 + $0x98] sm:$0xff] 0.0
      %77 = vst [vmem:[#allocation2 + $0xa0] sm:$0xff] 0.0
      %78 = vst [vmem:[#allocation2 + $0xa8] sm:$0xff] 0.0
      %79 = vst [vmem:[#allocation2 + $0xb0] sm:$0xff] 0.0
      %80 = vst [vmem:[#allocation2 + $0xb8] sm:$0xff] 0.0
      %81 = vst [vmem:[#allocation2 + $0xc0] sm:$0xff] 0.0
      %82 = vst [vmem:[#allocation2 + $0xc8] sm:$0xff] 0.0
      %83 = vst [vmem:[#allocation2 + $0xd0] sm:$0xff] 0.0
      %84 = vst [vmem:[#allocation2 + $0xd8] sm:$0xff] 0.0
      %85 = vst [vmem:[#allocation2 + $0xe0] sm:$0xff] 0.0
      %86 = vst [vmem:[#allocation2 + $0xe8] sm:$0xff] 0.0
      %87 = vst [vmem:[#allocation2 + $0xf0] sm:$0xff] 0.0
      %88 = vst [vmem:[#allocation2 + $0xf8] sm:$0xff] 0.0
      %89 = vst [vmem:[#allocation2 + $0x100] sm:$0xff] 0.0
      %90 = vst [vmem:[#allocation2 + $0x108] sm:$0xff] 0.0
      %91 = vst [vmem:[#allocation2 + $0x110] sm:$0xff] 0.0
      %92 = vst [vmem:[#allocation2 + $0x118] sm:$0xff] 0.0
      %93 = vst [vmem:[#allocation2 + $0x120] sm:$0xff] 0.0
      %94 = vst [vmem:[#allocation2 + $0x128] sm:$0xff] 0.0
      %95 = vst [vmem:[#allocation2 + $0x130] sm:$0xff] 0.0
      %96 = vst [vmem:[#allocation2 + $0x138] sm:$0xff] 0.0
      %97 = vst [vmem:[#allocation2 + $0x140] sm:$0xff] 0.0
      %98 = vst [vmem:[#allocation2 + $0x148] sm:$0xff] 0.0
      %99 = vst [vmem:[#allocation2 + $0x150] sm:$0xff] 0.0
      %100 = vst [vmem:[#allocation2 + $0x158] sm:$0xff] 0.0
      %101 = vst [vmem:[#allocation2 + $0x160] sm:$0xff] 0.0
      %102 = vst [vmem:[#allocation2 + $0x168] sm:$0xff] 0.0
      %103 = vst [vmem:[#allocation2 + $0x170] sm:$0xff] 0.0
      %104 = vst [vmem:[#allocation2 + $0x178] sm:$0xff] 0.0
      %105 = vst [vmem:[#allocation2 + $0x180] sm:$0xff] 0.0
      %106 = vst [vmem:[#allocation2 + $0x188] sm:$0xff] 0.0
      %107 = vst [vmem:[#allocation2 + $0x190] sm:$0xff] 0.0
      %108 = vst [vmem:[#allocation2 + $0x198] sm:$0xff] 0.0
      %109 = vst [vmem:[#allocation2 + $0x1a0] sm:$0xff] 0.0
      %110 = vst [vmem:[#allocation2 + $0x1a8] sm:$0xff] 0.0
      %111 = vst [vmem:[#allocation2 + $0x1b0] sm:$0xff] 0.0
      %112 = vst [vmem:[#allocation2 + $0x1b8] sm:$0xff] 0.0
      %113 = vst [vmem:[#allocation2 + $0x1c0] sm:$0xff] 0.0
      %114 = vst [vmem:[#allocation2 + $0x1c8] sm:$0xff] 0.0
      %115 = vst [vmem:[#allocation2 + $0x1d0] sm:$0xff] 0.0
      %116 = vst [vmem:[#allocation2 + $0x1d8] sm:$0xff] 0.0
      %117 = vst [vmem:[#allocation2 + $0x1e0] sm:$0xff] 0.0
      %118 = vst [vmem:[#allocation2 + $0x1e8] sm:$0xff] 0.0
      %119 = vst [vmem:[#allocation2 + $0x1f0] sm:$0xff] 0.0
      %120 = vst [vmem:[#allocation2 + $0x1f8] sm:$0xff] 0.0
    $region37: #{tpu_custom_call.1} parent=1 // pred_fallthru
      _
    %v121 = vld [vmem:[#allocation2] sm:$0xff]
    %v122 = vld [vmem:[#allocation2 + $0x8] sm:$0xff]
    %v123 = vld [vmem:[#allocation2 + $0x10] sm:$0xff]
    %v124 = vld [vmem:[#allocation2 + $0x18] sm:$0xff]
    %v125 = vld [vmem:[#allocation2 + $0x20] sm:$0xff]
    %v126 = vld [vmem:[#allocation2 + $0x28] sm:$0xff]
    %v127 = vld [vmem:[#allocation2 + $0x30] sm:$0xff]
    %v128 = vld [vmem:[#allocation2 + $0x38] sm:$0xff]
    %v129 = vld [vmem:[#allocation2 + $0x40] sm:$0xff]
    %v130 = vld [vmem:[#allocation2 + $0x48] sm:$0xff]
    %v131 = vld [vmem:[#allocation2 + $0x50] sm:$0xff]
    %v132 = vld [vmem:[#allocation2 + $0x58] sm:$0xff]
    %v133 = vld [vmem:[#allocation2 + $0x60] sm:$0xff]
    %v134 = vld [vmem:[#allocation2 + $0x68] sm:$0xff]
    %v135 = vld [vmem:[#allocation2 + $0x70] sm:$0xff]
    %v136 = vld [vmem:[#allocation2 + $0x78] sm:$0xff]
    %v137 = vld [vmem:[#allocation2 + $0x80] sm:$0xff]
    %v138 = vld [vmem:[#allocation2 + $0x88] sm:$0xff]
    %v139 = vld [vmem:[#allocation2 + $0x90] sm:$0xff]
    %v140 = vld [vmem:[#allocation2 + $0x98] sm:$0xff]
    %v141 = vld [vmem:[#allocation2 + $0xa0] sm:$0xff]
    %v142 = vld [vmem:[#allocation2 + $0xa8] sm:$0xff]
    %v143 = vld [vmem:[#allocation2 + $0xb0] sm:$0xff]
    %v144 = vld [vmem:[#allocation2 + $0xb8] sm:$0xff]
    %v145 = vld [vmem:[#allocation2 + $0xc0] sm:$0xff]
    %v146 = vld [vmem:[#allocation2 + $0xc8] sm:$0xff]
    %v147 = vld [vmem:[#allocation2 + $0xd0] sm:$0xff]
    %v148 = vld [vmem:[#allocation2 + $0xd8] sm:$0xff]
    %v149 = vld [vmem:[#allocation2 + $0xe0] sm:$0xff]
    %v150 = vld [vmem:[#allocation2 + $0xe8] sm:$0xff]
    %v151 = vld [vmem:[#allocation2 + $0xf0] sm:$0xff]
    %v152 = vld [vmem:[#allocation2 + $0xf8] sm:$0xff]
    %v153 = vld [vmem:[#allocation2 + $0x100] sm:$0xff]
    %v154 = vld [vmem:[#allocation2 + $0x108] sm:$0xff]
    %v155 = vld [vmem:[#allocation2 + $0x110] sm:$0xff]
    %v156 = vld [vmem:[#allocation2 + $0x118] sm:$0xff]
    %v157 = vld [vmem:[#allocation2 + $0x120] sm:$0xff]
    %v158 = vld [vmem:[#allocation2 + $0x128] sm:$0xff]
    %v159 = vld [vmem:[#allocation2 + $0x130] sm:$0xff]
    %v160 = vld [vmem:[#allocation2 + $0x138] sm:$0xff]
    %v161 = vld [vmem:[#allocation2 + $0x140] sm:$0xff]
    %v162 = vld [vmem:[#allocation2 + $0x148] sm:$0xff]
    %v163 = vld [vmem:[#allocation2 + $0x150] sm:$0xff]
    %v164 = vld [vmem:[#allocation2 + $0x158] sm:$0xff]
    %v165 = vld [vmem:[#allocation2 + $0x160] sm:$0xff]
    %v166 = vld [vmem:[#allocation2 + $0x168] sm:$0xff]
    %v167 = vld [vmem:[#allocation2 + $0x170] sm:$0xff]
    %v168 = vld [vmem:[#allocation2 + $0x178] sm:$0xff]
    %v169 = vld [vmem:[#allocation2 + $0x180] sm:$0xff]
    %v170 = vld [vmem:[#allocation2 + $0x188] sm:$0xff]
    %v171 = vld [vmem:[#allocation2 + $0x190] sm:$0xff]
    %v172 = vld [vmem:[#allocation2 + $0x198] sm:$0xff]
    %v173 = vld [vmem:[#allocation2 + $0x1a0] sm:$0xff]
    %v174 = vld [vmem:[#allocation2 + $0x1a8] sm:$0xff]
    %v175 = vld [vmem:[#allocation2 + $0x1b0] sm:$0xff]
    %v176 = vld [vmem:[#allocation2 + $0x1b8] sm:$0xff]
    %v177 = vld [vmem:[#allocation2 + $0x1c0] sm:$0xff]
    %v178 = vld [vmem:[#allocation2 + $0x1c8] sm:$0xff]
    %v179 = vld [vmem:[#allocation2 + $0x1d0] sm:$0xff]
    %v180 = vld [vmem:[#allocation2 + $0x1d8] sm:$0xff]
    %v181 = vld [vmem:[#allocation2 + $0x1e0] sm:$0xff]
    %v182 = vld [vmem:[#allocation2 + $0x1e8] sm:$0xff]
    %v183 = vld [vmem:[#allocation2 + $0x1f0] sm:$0xff]
    %v184 = vld [vmem:[#allocation2 + $0x1f8] sm:$0xff]
    %v185 = vld [vmem:[#allocation3] sm:$0xff]
    %v186 = vld [vmem:[#allocation3 + $0x8] sm:$0xff]
    %v187 = vld [vmem:[#allocation3 + $0x10] sm:$0xff]
    %v188 = vld [vmem:[#allocation3 + $0x18] sm:$0xff]
    %v189 = vld [vmem:[#allocation3 + $0x20] sm:$0xff]
    %v190 = vld [vmem:[#allocation3 + $0x28] sm:$0xff]
    %v191 = vld [vmem:[#allocation3 + $0x30] sm:$0xff]
    %v192 = vld [vmem:[#allocation3 + $0x38] sm:$0xff]
    %v193 = vld [vmem:[#allocation3 + $0x40] sm:$0xff]
    %v194 = vld [vmem:[#allocation3 + $0x48] sm:$0xff]
    %v195 = vld [vmem:[#allocation3 + $0x50] sm:$0xff]
    %v196 = vld [vmem:[#allocation3 + $0x58] sm:$0xff]
    %v197 = vld [vmem:[#allocation3 + $0x60] sm:$0xff]
    %v198 = vld [vmem:[#allocation3 + $0x68] sm:$0xff]
    %v199 = vld [vmem:[#allocation3 + $0x70] sm:$0xff]
    %v200 = vld [vmem:[#allocation3 + $0x78] sm:$0xff]
    %v201 = vld [vmem:[#allocation3 + $0x80] sm:$0xff]
    %v202 = vld [vmem:[#allocation3 + $0x88] sm:$0xff]
    %v203 = vld [vmem:[#allocation3 + $0x90] sm:$0xff]
    %v204 = vld [vmem:[#allocation3 + $0x98] sm:$0xff]
    %v205 = vld [vmem:[#allocation3 + $0xa0] sm:$0xff]
    %v206 = vld [vmem:[#allocation3 + $0xa8] sm:$0xff]
    %v207 = vld [vmem:[#allocation3 + $0xb0] sm:$0xff]
    %v208 = vld [vmem:[#allocation3 + $0xb8] sm:$0xff]
    %v209 = vld [vmem:[#allocation3 + $0xc0] sm:$0xff]
    %v210 = vld [vmem:[#allocation3 + $0xc8] sm:$0xff]
    %v211 = vld [vmem:[#allocation3 + $0xd0] sm:$0xff]
    %v212 = vld [vmem:[#allocation3 + $0xd8] sm:$0xff]
    %v213 = vld [vmem:[#allocation3 + $0xe0] sm:$0xff]
    %v214 = vld [vmem:[#allocation3 + $0xe8] sm:$0xff]
    %v215 = vld [vmem:[#allocation3 + $0xf0] sm:$0xff]
    %v216 = vld [vmem:[#allocation3 + $0xf8] sm:$0xff]
    %v217 = vld [vmem:[#allocation3 + $0x100] sm:$0xff]
    %v218 = vld [vmem:[#allocation3 + $0x108] sm:$0xff]
    %v219 = vld [vmem:[#allocation3 + $0x110] sm:$0xff]
    %v220 = vld [vmem:[#allocation3 + $0x118] sm:$0xff]
    %v221 = vld [vmem:[#allocation3 + $0x120] sm:$0xff]
    %v222 = vld [vmem:[#allocation3 + $0x128] sm:$0xff]
    %v223 = vld [vmem:[#allocation3 + $0x130] sm:$0xff]
    %v224 = vld [vmem:[#allocation3 + $0x138] sm:$0xff]
    %v225 = vld [vmem:[#allocation3 + $0x140] sm:$0xff]
    %v226 = vld [vmem:[#allocation3 + $0x148] sm:$0xff]
    %v227 = vld [vmem:[#allocation3 + $0x150] sm:$0xff]
    %v228 = vld [vmem:[#allocation3 + $0x158] sm:$0xff]
    %v229 = vld [vmem:[#allocation3 + $0x160] sm:$0xff]
    %v230 = vld [vmem:[#allocation3 + $0x168] sm:$0xff]
    %v231 = vld [vmem:[#allocation3 + $0x170] sm:$0xff]
    %v232 = vld [vmem:[#allocation3 + $0x178] sm:$0xff]
    %v233 = vld [vmem:[#allocation3 + $0x180] sm:$0xff]
    %v234 = vld [vmem:[#allocation3 + $0x188] sm:$0xff]
    %v235 = vld [vmem:[#allocation3 + $0x190] sm:$0xff]
    %v236 = vld [vmem:[#allocation3 + $0x198] sm:$0xff]
    %v237 = vld [vmem:[#allocation3 + $0x1a0] sm:$0xff]
    %v238 = vld [vmem:[#allocation3 + $0x1a8] sm:$0xff]
    %v239 = vld [vmem:[#allocation3 + $0x1b0] sm:$0xff]
    %v240 = vld [vmem:[#allocation3 + $0x1b8] sm:$0xff]
    %v241 = vld [vmem:[#allocation3 + $0x1c0] sm:$0xff]
    %v242 = vld [vmem:[#allocation3 + $0x1c8] sm:$0xff]
    %v243 = vld [vmem:[#allocation3 + $0x1d0] sm:$0xff]
    %v244 = vld [vmem:[#allocation3 + $0x1d8] sm:$0xff]
    %v245 = vld [vmem:[#allocation3 + $0x1e0] sm:$0xff]
    %v246 = vld [vmem:[#allocation3 + $0x1e8] sm:$0xff]
    %v247 = vld [vmem:[#allocation3 + $0x1f0] sm:$0xff]
    %v248 = vld [vmem:[#allocation3 + $0x1f8] sm:$0xff]
    %v249 = vld [vmem:[#allocation3 + $0x200] sm:$0xff]
    %v250 = vld [vmem:[#allocation3 + $0x208] sm:$0xff]
    %v251 = vld [vmem:[#allocation3 + $0x210] sm:$0xff]
    %v252 = vld [vmem:[#allocation3 + $0x218] sm:$0xff]
    %v253 = vld [vmem:[#allocation3 + $0x220] sm:$0xff]
    %v254 = vld [vmem:[#allocation3 + $0x228] sm:$0xff]
    %v255 = vld [vmem:[#allocation3 + $0x230] sm:$0xff]
    %v256 = vld [vmem:[#allocation3 + $0x238] sm:$0xff]
    %v257 = vld [vmem:[#allocation3 + $0x240] sm:$0xff]
    %v258 = vld [vmem:[#allocation3 + $0x248] sm:$0xff]
    %v259 = vld [vmem:[#allocation3 + $0x250] sm:$0xff]
    %v260 = vld [vmem:[#allocation3 + $0x258] sm:$0xff]
    %v261 = vld [vmem:[#allocation3 + $0x260] sm:$0xff]
    %v262 = vld [vmem:[#allocation3 + $0x268] sm:$0xff]
    %v263 = vld [vmem:[#allocation3 + $0x270] sm:$0xff]
    %v264 = vld [vmem:[#allocation3 + $0x278] sm:$0xff]
    %v265 = vld [vmem:[#allocation3 + $0x280] sm:$0xff]
    %v266 = vld [vmem:[#allocation3 + $0x288] sm:$0xff]
    %v267 = vld [vmem:[#allocation3 + $0x290] sm:$0xff]
    %v268 = vld [vmem:[#allocation3 + $0x298] sm:$0xff]
    %v269 = vld [vmem:[#allocation3 + $0x2a0] sm:$0xff]
    %v270 = vld [vmem:[#allocation3 + $0x2a8] sm:$0xff]
    %v271 = vld [vmem:[#allocation3 + $0x2b0] sm:$0xff]
    %v272 = vld [vmem:[#allocation3 + $0x2b8] sm:$0xff]
    %v273 = vld [vmem:[#allocation3 + $0x2c0] sm:$0xff]
    %v274 = vld [vmem:[#allocation3 + $0x2c8] sm:$0xff]
    %v275 = vld [vmem:[#allocation3 + $0x2d0] sm:$0xff]
    %v276 = vld [vmem:[#allocation3 + $0x2d8] sm:$0xff]
    %v277 = vld [vmem:[#allocation3 + $0x2e0] sm:$0xff]
    %v278 = vld [vmem:[#allocation3 + $0x2e8] sm:$0xff]
    %v279 = vld [vmem:[#allocation3 + $0x2f0] sm:$0xff]
    %v280 = vld [vmem:[#allocation3 + $0x2f8] sm:$0xff]
    %v281 = vld [vmem:[#allocation3 + $0x300] sm:$0xff]
    %v282 = vld [vmem:[#allocation3 + $0x308] sm:$0xff]
    %v283 = vld [vmem:[#allocation3 + $0x310] sm:$0xff]
    %v284 = vld [vmem:[#allocation3 + $0x318] sm:$0xff]
    %v285 = vld [vmem:[#allocation3 + $0x320] sm:$0xff]
    %v286 = vld [vmem:[#allocation3 + $0x328] sm:$0xff]
    %v287 = vld [vmem:[#allocation3 + $0x330] sm:$0xff]
    %v288 = vld [vmem:[#allocation3 + $0x338] sm:$0xff]
    %v289 = vld [vmem:[#allocation3 + $0x340] sm:$0xff]
    %v290 = vld [vmem:[#allocation3 + $0x348] sm:$0xff]
    %v291 = vld [vmem:[#allocation3 + $0x350] sm:$0xff]
    %v292 = vld [vmem:[#allocation3 + $0x358] sm:$0xff]
    %v293 = vld [vmem:[#allocation3 + $0x360] sm:$0xff]
    %v294 = vld [vmem:[#allocation3 + $0x368] sm:$0xff]
    %v295 = vld [vmem:[#allocation3 + $0x370] sm:$0xff]
    %v296 = vld [vmem:[#allocation3 + $0x378] sm:$0xff]
    %v297 = vld [vmem:[#allocation3 + $0x380] sm:$0xff]
    %v298 = vld [vmem:[#allocation3 + $0x388] sm:$0xff]
    %v299 = vld [vmem:[#allocation3 + $0x390] sm:$0xff]
    %v300 = vld [vmem:[#allocation3 + $0x398] sm:$0xff]
    %v301 = vld [vmem:[#allocation3 + $0x3a0] sm:$0xff]
    %v302 = vld [vmem:[#allocation3 + $0x3a8] sm:$0xff]
    %v303 = vld [vmem:[#allocation3 + $0x3b0] sm:$0xff]
    %v304 = vld [vmem:[#allocation3 + $0x3b8] sm:$0xff]
    %v305 = vld [vmem:[#allocation3 + $0x3c0] sm:$0xff]
    %v306 = vld [vmem:[#allocation3 + $0x3c8] sm:$0xff]
    %v307 = vld [vmem:[#allocation3 + $0x3d0] sm:$0xff]
    %v308 = vld [vmem:[#allocation3 + $0x3d8] sm:$0xff]
    %v309 = vld [vmem:[#allocation3 + $0x3e0] sm:$0xff]
    %v310 = vld [vmem:[#allocation3 + $0x3e8] sm:$0xff]
    %v311 = vld [vmem:[#allocation3 + $0x3f0] sm:$0xff]
    %v312 = vld [vmem:[#allocation3 + $0x3f8] sm:$0xff]
    %v313 = vld [vmem:[%s1] sm:$0xf]
    %v314 = vld [vmem:[%s1 + $0x4] sm:$0xf]
    %v315 = vld [vmem:[%s1 + $0x8] sm:$0xf]
    %v316 = vld [vmem:[%s1 + $0xc] sm:$0xf]
    %v317 = vld [vmem:[%s1 + $0x10] sm:$0xf]
    %v318 = vld [vmem:[%s1 + $0x14] sm:$0xf]
    %v319 = vld [vmem:[%s1 + $0x18] sm:$0xf]
    %v320 = vld [vmem:[%s1 + $0x1c] sm:$0xf]
    %v321 = vld [vmem:[%s1 + $0x20] sm:$0xf]
    %v322 = vld [vmem:[%s1 + $0x24] sm:$0xf]
    %v323 = vld [vmem:[%s1 + $0x28] sm:$0xf]
    %v324 = vld [vmem:[%s1 + $0x2c] sm:$0xf]
    %v325 = vld [vmem:[%s1 + $0x30] sm:$0xf]
    %v326 = vld [vmem:[%s1 + $0x34] sm:$0xf]
    %v327 = vld [vmem:[%s1 + $0x38] sm:$0xf]
    %v328 = vld [vmem:[%s1 + $0x3c] sm:$0xf]
    %v329 = vld [vmem:[%s1 + $0x40] sm:$0xf]
    %v330 = vld [vmem:[%s1 + $0x44] sm:$0xf]
    %v331 = vld [vmem:[%s1 + $0x48] sm:$0xf]
    %v332 = vld [vmem:[%s1 + $0x4c] sm:$0xf]
    %v333 = vld [vmem:[%s1 + $0x50] sm:$0xf]
    %v334 = vld [vmem:[%s1 + $0x54] sm:$0xf]
    %v335 = vld [vmem:[%s1 + $0x58] sm:$0xf]
    %v336 = vld [vmem:[%s1 + $0x5c] sm:$0xf]
    %v337 = vld [vmem:[%s1 + $0x60] sm:$0xf]
    %v338 = vld [vmem:[%s1 + $0x64] sm:$0xf]
    %v339 = vld [vmem:[%s1 + $0x68] sm:$0xf]
    %v340 = vld [vmem:[%s1 + $0x6c] sm:$0xf]
    %v341 = vld [vmem:[%s1 + $0x70] sm:$0xf]
    %v342 = vld [vmem:[%s1 + $0x74] sm:$0xf]
    %v343 = vld [vmem:[%s1 + $0x78] sm:$0xf]
    %v344 = vld [vmem:[%s1 + $0x7c] sm:$0xf]
    %v345 = vld [vmem:[%s1 + $0x80] sm:$0xf]
    %v346 = vld [vmem:[%s1 + $0x84] sm:$0xf]
    %v347 = vld [vmem:[%s1 + $0x88] sm:$0xf]
    %v348 = vld [vmem:[%s1 + $0x8c] sm:$0xf]
    %v349 = vld [vmem:[%s1 + $0x90] sm:$0xf]
    %v350 = vld [vmem:[%s1 + $0x94] sm:$0xf]
    %v351 = vld [vmem:[%s1 + $0x98] sm:$0xf]
    %v352 = vld [vmem:[%s1 + $0x9c] sm:$0xf]
    %v353 = vld [vmem:[%s1 + $0xa0] sm:$0xf]
    %v354 = vld [vmem:[%s1 + $0xa4] sm:$0xf]
    %v355 = vld [vmem:[%s1 + $0xa8] sm:$0xf]
    %v356 = vld [vmem:[%s1 + $0xac] sm:$0xf]
    %v357 = vld [vmem:[%s1 + $0xb0] sm:$0xf]
    %v358 = vld [vmem:[%s1 + $0xb4] sm:$0xf]
    %v359 = vld [vmem:[%s1 + $0xb8] sm:$0xf]
    %v360 = vld [vmem:[%s1 + $0xbc] sm:$0xf]
    %v361 = vld [vmem:[%s1 + $0xc0] sm:$0xf]
    %v362 = vld [vmem:[%s1 + $0xc4] sm:$0xf]
    %v363 = vld [vmem:[%s1 + $0xc8] sm:$0xf]
    %v364 = vld [vmem:[%s1 + $0xcc] sm:$0xf]
    %v365 = vld [vmem:[%s1 + $0xd0] sm:$0xf]
    %v366 = vld [vmem:[%s1 + $0xd4] sm:$0xf]
    %v367 = vld [vmem:[%s1 + $0xd8] sm:$0xf]
    %v368 = vld [vmem:[%s1 + $0xdc] sm:$0xf]
    %v369 = vld [vmem:[%s1 + $0xe0] sm:$0xf]
    %v370 = vld [vmem:[%s1 + $0xe4] sm:$0xf]
    %v371 = vld [vmem:[%s1 + $0xe8] sm:$0xf]
    %v372 = vld [vmem:[%s1 + $0xec] sm:$0xf]
    %v373 = vld [vmem:[%s1 + $0xf0] sm:$0xf]
    %v374 = vld [vmem:[%s1 + $0xf4] sm:$0xf]
    %v375 = vld [vmem:[%s1 + $0xf8] sm:$0xf]
    %v376 = vld [vmem:[%s1 + $0xfc] sm:$0xf]
    %v505 = vunpack.c.l.b16 %v185
    %v506 = vunpack.c.h.b16 %v185
    %v507 = vunpack.c.l.b16 %v186
    %v508 = vunpack.c.h.b16 %v186
    %v509 = vunpack.c.l.b16 %v187
    %v510 = vunpack.c.h.b16 %v187
    %v511 = vunpack.c.l.b16 %v188
    %v512 = vunpack.c.h.b16 %v188
    %v513 = vunpack.c.l.b16 %v189
    %v514 = vunpack.c.h.b16 %v189
    %v515 = vunpack.c.l.b16 %v190
    %v516 = vunpack.c.h.b16 %v190
    %v517 = vunpack.c.l.b16 %v191
    %v518 = vunpack.c.h.b16 %v191
    %v519 = vunpack.c.l.b16 %v192
    %v520 = vunpack.c.h.b16 %v192
    %v521 = vunpack.c.l.b16 %v193
    %v522 = vunpack.c.h.b16 %v193
    %v523 = vunpack.c.l.b16 %v194
    %v524 = vunpack.c.h.b16 %v194
    %v525 = vunpack.c.l.b16 %v195
    %v526 = vunpack.c.h.b16 %v195
    %v527 = vunpack.c.l.b16 %v196
    %v528 = vunpack.c.h.b16 %v196
    %v529 = vunpack.c.l.b16 %v197
    %v530 = vunpack.c.h.b16 %v197
    %v531 = vunpack.c.l.b16 %v198
    %v532 = vunpack.c.h.b16 %v198
    %v533 = vunpack.c.l.b16 %v199
    %v534 = vunpack.c.h.b16 %v199
    %v535 = vunpack.c.l.b16 %v200
    %v536 = vunpack.c.h.b16 %v200
    %v537 = vunpack.c.l.b16 %v201
    %v538 = vunpack.c.h.b16 %v201
    %v539 = vunpack.c.l.b16 %v202
    %v540 = vunpack.c.h.b16 %v202
    %v541 = vunpack.c.l.b16 %v203
    %v542 = vunpack.c.h.b16 %v203
    %v543 = vunpack.c.l.b16 %v204
    %v544 = vunpack.c.h.b16 %v204
    %v545 = vunpack.c.l.b16 %v205
    %v546 = vunpack.c.h.b16 %v205
    %v547 = vunpack.c.l.b16 %v206
    %v548 = vunpack.c.h.b16 %v206
    %v549 = vunpack.c.l.b16 %v207
    %v550 = vunpack.c.h.b16 %v207
    %v551 = vunpack.c.l.b16 %v208
    %v552 = vunpack.c.h.b16 %v208
    %v553 = vunpack.c.l.b16 %v209
    %v554 = vunpack.c.h.b16 %v209
    %v555 = vunpack.c.l.b16 %v210
    %v556 = vunpack.c.h.b16 %v210
    %v557 = vunpack.c.l.b16 %v211
    %v558 = vunpack.c.h.b16 %v211
    %v559 = vunpack.c.l.b16 %v212
    %v560 = vunpack.c.h.b16 %v212
    %v561 = vunpack.c.l.b16 %v213
    %v562 = vunpack.c.h.b16 %v213
    %v563 = vunpack.c.l.b16 %v214
    %v564 = vunpack.c.h.b16 %v214
    %v565 = vunpack.c.l.b16 %v215
    %v566 = vunpack.c.h.b16 %v215
    %v567 = vunpack.c.l.b16 %v216
    %v568 = vunpack.c.h.b16 %v216
    %v569 = vunpack.c.l.b16 %v217
    %v570 = vunpack.c.h.b16 %v217
    %v571 = vunpack.c.l.b16 %v218
    %v572 = vunpack.c.h.b16 %v218
    %v573 = vunpack.c.l.b16 %v219
    %v574 = vunpack.c.h.b16 %v219
    %v575 = vunpack.c.l.b16 %v220
    %v576 = vunpack.c.h.b16 %v220
    %v577 = vunpack.c.l.b16 %v221
    %v578 = vunpack.c.h.b16 %v221
    %v579 = vunpack.c.l.b16 %v222
    %v580 = vunpack.c.h.b16 %v222
    %v581 = vunpack.c.l.b16 %v223
    %v582 = vunpack.c.h.b16 %v223
    %v583 = vunpack.c.l.b16 %v224
    %v584 = vunpack.c.h.b16 %v224
    %v585 = vunpack.c.l.b16 %v225
    %v586 = vunpack.c.h.b16 %v225
    %v587 = vunpack.c.l.b16 %v226
    %v588 = vunpack.c.h.b16 %v226
    %v589 = vunpack.c.l.b16 %v227
    %v590 = vunpack.c.h.b16 %v227
    %v591 = vunpack.c.l.b16 %v228
    %v592 = vunpack.c.h.b16 %v228
    %v593 = vunpack.c.l.b16 %v229
    %v594 = vunpack.c.h.b16 %v229
    %v595 = vunpack.c.l.b16 %v230
    %v596 = vunpack.c.h.b16 %v230
    %v597 = vunpack.c.l.b16 %v231
    %v598 = vunpack.c.h.b16 %v231
    %v599 = vunpack.c.l.b16 %v232
    %v600 = vunpack.c.h.b16 %v232
    %v601 = vunpack.c.l.b16 %v233
    %v602 = vunpack.c.h.b16 %v233
    %v603 = vunpack.c.l.b16 %v234
    %v604 = vunpack.c.h.b16 %v234
    %v605 = vunpack.c.l.b16 %v235
    %v606 = vunpack.c.h.b16 %v235
    %v607 = vunpack.c.l.b16 %v236
    %v608 = vunpack.c.h.b16 %v236
    %v609 = vunpack.c.l.b16 %v237
    %v610 = vunpack.c.h.b16 %v237
    %v611 = vunpack.c.l.b16 %v238
    %v612 = vunpack.c.h.b16 %v238
    %v613 = vunpack.c.l.b16 %v239
    %v614 = vunpack.c.h.b16 %v239
    %v615 = vunpack.c.l.b16 %v240
    %v616 = vunpack.c.h.b16 %v240
    %v617 = vunpack.c.l.b16 %v241
    %v618 = vunpack.c.h.b16 %v241
    %v619 = vunpack.c.l.b16 %v242
    %v620 = vunpack.c.h.b16 %v242
    %v621 = vunpack.c.l.b16 %v243
    %v622 = vunpack.c.h.b16 %v243
    %v623 = vunpack.c.l.b16 %v244
    %v624 = vunpack.c.h.b16 %v244
    %v625 = vunpack.c.l.b16 %v245
    %v626 = vunpack.c.h.b16 %v245
    %v627 = vunpack.c.l.b16 %v246
    %v628 = vunpack.c.h.b16 %v246
    %v629 = vunpack.c.l.b16 %v247
    %v630 = vunpack.c.h.b16 %v247
    %v631 = vunpack.c.l.b16 %v248
    %v632 = vunpack.c.h.b16 %v248
    %v633 = vunpack.c.l.b16 %v249
    %v634 = vunpack.c.h.b16 %v249
    %v635 = vunpack.c.l.b16 %v250
    %v636 = vunpack.c.h.b16 %v250
    %v637 = vunpack.c.l.b16 %v251
    %v638 = vunpack.c.h.b16 %v251
    %v639 = vunpack.c.l.b16 %v252
    %v640 = vunpack.c.h.b16 %v252
    %v641 = vunpack.c.l.b16 %v253
    %v642 = vunpack.c.h.b16 %v253
    %v643 = vunpack.c.l.b16 %v254
    %v644 = vunpack.c.h.b16 %v254
    %v645 = vunpack.c.l.b16 %v255
    %v646 = vunpack.c.h.b16 %v255
    %v647 = vunpack.c.l.b16 %v256
    %v648 = vunpack.c.h.b16 %v256
    %v649 = vunpack.c.l.b16 %v257
    %v650 = vunpack.c.h.b16 %v257
    %v651 = vunpack.c.l.b16 %v258
    %v652 = vunpack.c.h.b16 %v258
    %v653 = vunpack.c.l.b16 %v259
    %v654 = vunpack.c.h.b16 %v259
    %v655 = vunpack.c.l.b16 %v260
    %v656 = vunpack.c.h.b16 %v260
    %v657 = vunpack.c.l.b16 %v261
    %v658 = vunpack.c.h.b16 %v261
    %v659 = vunpack.c.l.b16 %v262
    %v660 = vunpack.c.h.b16 %v262
    %v661 = vunpack.c.l.b16 %v263
    %v662 = vunpack.c.h.b16 %v263
    %v663 = vunpack.c.l.b16 %v264
    %v664 = vunpack.c.h.b16 %v264
    %v665 = vunpack.c.l.b16 %v265
    %v666 = vunpack.c.h.b16 %v265
    %v667 = vunpack.c.l.b16 %v266
    %v668 = vunpack.c.h.b16 %v266
    %v669 = vunpack.c.l.b16 %v267
    %v670 = vunpack.c.h.b16 %v267
    %v671 = vunpack.c.l.b16 %v268
    %v672 = vunpack.c.h.b16 %v268
    %v673 = vunpack.c.l.b16 %v269
    %v674 = vunpack.c.h.b16 %v269
    %v675 = vunpack.c.l.b16 %v270
    %v676 = vunpack.c.h.b16 %v270
    %v677 = vunpack.c.l.b16 %v271
    %v678 = vunpack.c.h.b16 %v271
    %v679 = vunpack.c.l.b16 %v272
    %v680 = vunpack.c.h.b16 %v272
    %v681 = vunpack.c.l.b16 %v273
    %v682 = vunpack.c.h.b16 %v273
    %v683 = vunpack.c.l.b16 %v274
    %v684 = vunpack.c.h.b16 %v274
    %v685 = vunpack.c.l.b16 %v275
    %v686 = vunpack.c.h.b16 %v275
    %v687 = vunpack.c.l.b16 %v276
    %v688 = vunpack.c.h.b16 %v276
    %v689 = vunpack.c.l.b16 %v277
    %v690 = vunpack.c.h.b16 %v277
    %v691 = vunpack.c.l.b16 %v278
    %v692 = vunpack.c.h.b16 %v278
    %v693 = vunpack.c.l.b16 %v279
    %v694 = vunpack.c.h.b16 %v279
    %v695 = vunpack.c.l.b16 %v280
    %v696 = vunpack.c.h.b16 %v280
    %v697 = vunpack.c.l.b16 %v281
    %v698 = vunpack.c.h.b16 %v281
    %v699 = vunpack.c.l.b16 %v282
    %v700 = vunpack.c.h.b16 %v282
    %v701 = vunpack.c.l.b16 %v283
    %v702 = vunpack.c.h.b16 %v283
    %v703 = vunpack.c.l.b16 %v284
    %v704 = vunpack.c.h.b16 %v284
    %v705 = vunpack.c.l.b16 %v285
    %v706 = vunpack.c.h.b16 %v285
    %v707 = vunpack.c.l.b16 %v286
    %v708 = vunpack.c.h.b16 %v286
    %v709 = vunpack.c.l.b16 %v287
    %v710 = vunpack.c.h.b16 %v287
    %v711 = vunpack.c.l.b16 %v288
    %v712 = vunpack.c.h.b16 %v288
    %v713 = vunpack.c.l.b16 %v289
    %v714 = vunpack.c.h.b16 %v289
    %v715 = vunpack.c.l.b16 %v290
    %v716 = vunpack.c.h.b16 %v290
    %v717 = vunpack.c.l.b16 %v291
    %v718 = vunpack.c.h.b16 %v291
    %v719 = vunpack.c.l.b16 %v292
    %v720 = vunpack.c.h.b16 %v292
    %v721 = vunpack.c.l.b16 %v293
    %v722 = vunpack.c.h.b16 %v293
    %v723 = vunpack.c.l.b16 %v294
    %v724 = vunpack.c.h.b16 %v294
    %v725 = vunpack.c.l.b16 %v295
    %v726 = vunpack.c.h.b16 %v295
    %v727 = vunpack.c.l.b16 %v296
    %v728 = vunpack.c.h.b16 %v296
    %v729 = vunpack.c.l.b16 %v297
    %v730 = vunpack.c.h.b16 %v297
    %v731 = vunpack.c.l.b16 %v298
    %v732 = vunpack.c.h.b16 %v298
    %v733 = vunpack.c.l.b16 %v299
    %v734 = vunpack.c.h.b16 %v299
    %v735 = vunpack.c.l.b16 %v300
    %v736 = vunpack.c.h.b16 %v300
    %v737 = vunpack.c.l.b16 %v301
    %v738 = vunpack.c.h.b16 %v301
    %v739 = vunpack.c.l.b16 %v302
    %v740 = vunpack.c.h.b16 %v302
    %v741 = vunpack.c.l.b16 %v303
    %v742 = vunpack.c.h.b16 %v303
    %v743 = vunpack.c.l.b16 %v304
    %v744 = vunpack.c.h.b16 %v304
    %v745 = vunpack.c.l.b16 %v305
    %v746 = vunpack.c.h.b16 %v305
    %v747 = vunpack.c.l.b16 %v306
    %v748 = vunpack.c.h.b16 %v306
    %v749 = vunpack.c.l.b16 %v307
    %v750 = vunpack.c.h.b16 %v307
    %v751 = vunpack.c.l.b16 %v308
    %v752 = vunpack.c.h.b16 %v308
    %v753 = vunpack.c.l.b16 %v309
    %v754 = vunpack.c.h.b16 %v309
    %v755 = vunpack.c.l.b16 %v310
    %v756 = vunpack.c.h.b16 %v310
    %v757 = vunpack.c.l.b16 %v311
    %v758 = vunpack.c.h.b16 %v311
    %v759 = vunpack.c.l.b16 %v312
    %v760 = vunpack.c.h.b16 %v312
    %v761 = vpack.c.b16 %v509, %v505
    %v762 = vpack.c.b16 %v510, %v506
    %v763 = vpack.c.b16 %v511, %v507
    %v764 = vpack.c.b16 %v512, %v508
    %v765 = vpack.c.b16 %v517, %v513
    %v766 = vpack.c.b16 %v518, %v514
    %v767 = vpack.c.b16 %v519, %v515
    %v768 = vpack.c.b16 %v520, %v516
    %v769 = vpack.c.b16 %v525, %v521
    %v770 = vpack.c.b16 %v526, %v522
    %v771 = vpack.c.b16 %v527, %v523
    %v772 = vpack.c.b16 %v528, %v524
    %v773 = vpack.c.b16 %v533, %v529
    %v774 = vpack.c.b16 %v534, %v530
    %v775 = vpack.c.b16 %v535, %v531
    %v776 = vpack.c.b16 %v536, %v532
    %v777 = vpack.c.b16 %v541, %v537
    %v778 = vpack.c.b16 %v542, %v538
    %v779 = vpack.c.b16 %v543, %v539
    %v780 = vpack.c.b16 %v544, %v540
    %v781 = vpack.c.b16 %v549, %v545
    %v782 = vpack.c.b16 %v550, %v546
    %v783 = vpack.c.b16 %v551, %v547
    %v784 = vpack.c.b16 %v552, %v548
    %v785 = vpack.c.b16 %v557, %v553
    %v786 = vpack.c.b16 %v558, %v554
    %v787 = vpack.c.b16 %v559, %v555
    %v788 = vpack.c.b16 %v560, %v556
    %v789 = vpack.c.b16 %v565, %v561
    %v790 = vpack.c.b16 %v566, %v562
    %v791 = vpack.c.b16 %v567, %v563
    %v792 = vpack.c.b16 %v568, %v564
    %v793 = vpack.c.b16 %v573, %v569
    %v794 = vpack.c.b16 %v574, %v570
    %v795 = vpack.c.b16 %v575, %v571
    %v796 = vpack.c.b16 %v576, %v572
    %v797 = vpack.c.b16 %v581, %v577
    %v798 = vpack.c.b16 %v582, %v578
    %v799 = vpack.c.b16 %v583, %v579
    %v800 = vpack.c.b16 %v584, %v580
    %v801 = vpack.c.b16 %v589, %v585
    %v802 = vpack.c.b16 %v590, %v586
    %v803 = vpack.c.b16 %v591, %v587
    %v804 = vpack.c.b16 %v592, %v588
    %v805 = vpack.c.b16 %v597, %v593
    %v806 = vpack.c.b16 %v598, %v594
    %v807 = vpack.c.b16 %v599, %v595
    %v808 = vpack.c.b16 %v600, %v596
    %v809 = vpack.c.b16 %v605, %v601
    %v810 = vpack.c.b16 %v606, %v602
    %v811 = vpack.c.b16 %v607, %v603
    %v812 = vpack.c.b16 %v608, %v604
    %v813 = vpack.c.b16 %v613, %v609
    %v814 = vpack.c.b16 %v614, %v610
    %v815 = vpack.c.b16 %v615, %v611
    %v816 = vpack.c.b16 %v616, %v612
    %v817 = vpack.c.b16 %v621, %v617
    %v818 = vpack.c.b16 %v622, %v618
    %v819 = vpack.c.b16 %v623, %v619
    %v820 = vpack.c.b16 %v624, %v620
    %v821 = vpack.c.b16 %v629, %v625
    %v822 = vpack.c.b16 %v630, %v626
    %v823 = vpack.c.b16 %v631, %v627
    %v824 = vpack.c.b16 %v632, %v628
    %v825 = vpack.c.b16 %v637, %v633
    %v826 = vpack.c.b16 %v638, %v634
    %v827 = vpack.c.b16 %v639, %v635
    %v828 = vpack.c.b16 %v640, %v636
    %v829 = vpack.c.b16 %v645, %v641
    %v830 = vpack.c.b16 %v646, %v642
    %v831 = vpack.c.b16 %v647, %v643
    %v832 = vpack.c.b16 %v648, %v644
    %v833 = vpack.c.b16 %v653, %v649
    %v834 = vpack.c.b16 %v654, %v650
    %v835 = vpack.c.b16 %v655, %v651
    %v836 = vpack.c.b16 %v656, %v652
    %v837 = vpack.c.b16 %v661, %v657
    %v838 = vpack.c.b16 %v662, %v658
    %v839 = vpack.c.b16 %v663, %v659
    %v840 = vpack.c.b16 %v664, %v660
    %v841 = vpack.c.b16 %v669, %v665
    %v842 = vpack.c.b16 %v670, %v666
    %v843 = vpack.c.b16 %v671, %v667
    %v844 = vpack.c.b16 %v672, %v668
    %v845 = vpack.c.b16 %v677, %v673
    %v846 = vpack.c.b16 %v678, %v674
    %v847 = vpack.c.b16 %v679, %v675
    %v848 = vpack.c.b16 %v680, %v676
    %v849 = vpack.c.b16 %v685, %v681
    %v850 = vpack.c.b16 %v686, %v682
    %v851 = vpack.c.b16 %v687, %v683
    %v852 = vpack.c.b16 %v688, %v684
    %v853 = vpack.c.b16 %v693, %v689
    %v854 = vpack.c.b16 %v694, %v690
    %v855 = vpack.c.b16 %v695, %v691
    %v856 = vpack.c.b16 %v696, %v692
    %v857 = vpack.c.b16 %v701, %v697
    %v858 = vpack.c.b16 %v702, %v698
    %v859 = vpack.c.b16 %v703, %v699
    %v860 = vpack.c.b16 %v704, %v700
    %v861 = vpack.c.b16 %v709, %v705
    %v862 = vpack.c.b16 %v710, %v706
    %v863 = vpack.c.b16 %v711, %v707
    %v864 = vpack.c.b16 %v712, %v708
    %v865 = vpack.c.b16 %v717, %v713
    %v866 = vpack.c.b16 %v718, %v714
    %v867 = vpack.c.b16 %v719, %v715
    %v868 = vpack.c.b16 %v720, %v716
    %v869 = vpack.c.b16 %v725, %v721
    %v870 = vpack.c.b16 %v726, %v722
    %v871 = vpack.c.b16 %v727, %v723
    %v872 = vpack.c.b16 %v728, %v724
    %v873 = vpack.c.b16 %v733, %v729
    %v874 = vpack.c.b16 %v734, %v730
    %v875 = vpack.c.b16 %v735, %v731
    %v876 = vpack.c.b16 %v736, %v732
    %v877 = vpack.c.b16 %v741, %v737
    %v878 = vpack.c.b16 %v742, %v738
    %v879 = vpack.c.b16 %v743, %v739
    %v880 = vpack.c.b16 %v744, %v740
    %v881 = vpack.c.b16 %v749, %v745
    %v882 = vpack.c.b16 %v750, %v746
    %v883 = vpack.c.b16 %v751, %v747
    %v884 = vpack.c.b16 %v752, %v748
    %v885 = vpack.c.b16 %v757, %v753
    %v886 = vpack.c.b16 %v758, %v754
    %v887 = vpack.c.b16 %v759, %v755
    %v888 = vpack.c.b16 %v760, %v756
    %v1081 = vunpack.c.l.b16 %v313
    %v1082 = vunpack.c.l.b16 %v314
    %v1083 = vunpack.c.l.b16 %v315
    %v1084 = vunpack.c.l.b16 %v316
    %v1085 = vunpack.c.l.b16 %v317
    %v1086 = vunpack.c.l.b16 %v318
    %v1087 = vunpack.c.l.b16 %v319
    %v1088 = vunpack.c.l.b16 %v320
    %v1089 = vunpack.c.l.b16 %v321
    %v1090 = vunpack.c.l.b16 %v322
    %v1091 = vunpack.c.l.b16 %v323
    %v1092 = vunpack.c.l.b16 %v324
    %v1093 = vunpack.c.l.b16 %v325
    %v1094 = vunpack.c.l.b16 %v326
    %v1095 = vunpack.c.l.b16 %v327
    %v1096 = vunpack.c.l.b16 %v328
    %v1097 = vunpack.c.l.b16 %v329
    %v1098 = vunpack.c.l.b16 %v330
    %v1099 = vunpack.c.l.b16 %v331
    %v1100 = vunpack.c.l.b16 %v332
    %v1101 = vunpack.c.l.b16 %v333
    %v1102 = vunpack.c.l.b16 %v334
    %v1103 = vunpack.c.l.b16 %v335
    %v1104 = vunpack.c.l.b16 %v336
    %v1105 = vunpack.c.l.b16 %v337
    %v1106 = vunpack.c.l.b16 %v338
    %v1107 = vunpack.c.l.b16 %v339
    %v1108 = vunpack.c.l.b16 %v340
    %v1109 = vunpack.c.l.b16 %v341
    %v1110 = vunpack.c.l.b16 %v342
    %v1111 = vunpack.c.l.b16 %v343
    %v1112 = vunpack.c.l.b16 %v344
    %v1113 = vunpack.c.l.b16 %v345
    %v1114 = vunpack.c.l.b16 %v346
    %v1115 = vunpack.c.l.b16 %v347
    %v1116 = vunpack.c.l.b16 %v348
    %v1117 = vunpack.c.l.b16 %v349
    %v1118 = vunpack.c.l.b16 %v350
    %v1119 = vunpack.c.l.b16 %v351
    %v1120 = vunpack.c.l.b16 %v352
    %v1121 = vunpack.c.l.b16 %v353
    %v1122 = vunpack.c.l.b16 %v354
    %v1123 = vunpack.c.l.b16 %v355
    %v1124 = vunpack.c.l.b16 %v356
    %v1125 = vunpack.c.l.b16 %v357
    %v1126 = vunpack.c.l.b16 %v358
    %v1127 = vunpack.c.l.b16 %v359
    %v1128 = vunpack.c.l.b16 %v360
    %v1129 = vunpack.c.l.b16 %v361
    %v1130 = vunpack.c.l.b16 %v362
    %v1131 = vunpack.c.l.b16 %v363
    %v1132 = vunpack.c.l.b16 %v364
    %v1133 = vunpack.c.l.b16 %v365
    %v1134 = vunpack.c.l.b16 %v366
    %v1135 = vunpack.c.l.b16 %v367
    %v1136 = vunpack.c.l.b16 %v368
    %v1137 = vunpack.c.l.b16 %v369
    %v1138 = vunpack.c.l.b16 %v370
    %v1139 = vunpack.c.l.b16 %v371
    %v1140 = vunpack.c.l.b16 %v372
    %v1141 = vunpack.c.l.b16 %v373
    %v1142 = vunpack.c.l.b16 %v374
    %v1143 = vunpack.c.l.b16 %v375
    %v1144 = vunpack.c.l.b16 %v376
    %v1145 = vpack.c.b16 %v1082, %v1081
    %v1146 = vpack.c.b16 %v1084, %v1083
    %v1147 = vpack.c.b16 %v1086, %v1085
    %v1148 = vpack.c.b16 %v1088, %v1087
    %v1149 = vpack.c.b16 %v1090, %v1089
    %v1150 = vpack.c.b16 %v1092, %v1091
    %v1151 = vpack.c.b16 %v1094, %v1093
    %v1152 = vpack.c.b16 %v1096, %v1095
    %v1153 = vpack.c.b16 %v1098, %v1097
    %v1154 = vpack.c.b16 %v1100, %v1099
    %v1155 = vpack.c.b16 %v1102, %v1101
    %v1156 = vpack.c.b16 %v1104, %v1103
    %v1157 = vpack.c.b16 %v1106, %v1105
    %v1158 = vpack.c.b16 %v1108, %v1107
    %v1159 = vpack.c.b16 %v1110, %v1109
    %v1160 = vpack.c.b16 %v1112, %v1111
    %v1161 = vpack.c.b16 %v1114, %v1113
    %v1162 = vpack.c.b16 %v1116, %v1115
    %v1163 = vpack.c.b16 %v1118, %v1117
    %v1164 = vpack.c.b16 %v1120, %v1119
    %v1165 = vpack.c.b16 %v1122, %v1121
    %v1166 = vpack.c.b16 %v1124, %v1123
    %v1167 = vpack.c.b16 %v1126, %v1125
    %v1168 = vpack.c.b16 %v1128, %v1127
    %v1169 = vpack.c.b16 %v1130, %v1129
    %v1170 = vpack.c.b16 %v1132, %v1131
    %v1171 = vpack.c.b16 %v1134, %v1133
    %v1172 = vpack.c.b16 %v1136, %v1135
    %v1173 = vpack.c.b16 %v1138, %v1137
    %v1174 = vpack.c.b16 %v1140, %v1139
    %v1175 = vpack.c.b16 %v1142, %v1141
    %v1176 = vpack.c.b16 %v1144, %v1143
    %1209 = vmatprep.subr.bf16.mxu0 0
    %1210 = vmatpush1.bf16.msra.mxu0 %v1152
    %1211 = vmatprep.subr.bf16.mxu0 0
    %1212 = vmatpush1.bf16.msra.mxu0 %v1151
    %1213 = vmatprep.subr.bf16.mxu0 0
    %1214 = vmatpush1.bf16.msra.mxu0 %v1150
    %1215 = vmatprep.subr.bf16.mxu0 0
    %1216 = vmatpush1.bf16.msra.mxu0 %v1149
    %1217 = vmatprep.subr.bf16.mxu0 0
    %1218 = vmatpush1.bf16.msra.mxu0 %v1148
    %1219 = vmatprep.subr.bf16.mxu0 0
    %1220 = vmatpush1.bf16.msra.mxu0 %v1147
    %1221 = vmatprep.subr.bf16.mxu0 0
    %1222 = vmatpush1.bf16.msra.mxu0 %v1146
    %1223 = vmatprep.subr.bf16.mxu0 0
    %1224 = vmatpush1.bf16.msra.mxu0 %v1145
    %1225 = vmatprep.subr.bf16.mxu0 0
    %1226 = vmatpush2.bf16.msra.mxu0 %v1160
    %1227 = vmatprep.subr.bf16.mxu0 0
    %1228 = vmatpush2.bf16.msra.mxu0 %v1159
    %1229 = vmatprep.subr.bf16.mxu0 0
    %1230 = vmatpush2.bf16.msra.mxu0 %v1158
    %1231 = vmatprep.subr.bf16.mxu0 0
    %1232 = vmatpush2.bf16.msra.mxu0 %v1157
    %1233 = vmatprep.subr.bf16.mxu0 0
    %1234 = vmatpush2.bf16.msra.mxu0 %v1156
    %1235 = vmatprep.subr.bf16.mxu0 0
    %1236 = vmatpush2.bf16.msra.mxu0 %v1155
    %1237 = vmatprep.subr.bf16.mxu0 0
    %1238 = vmatpush2.bf16.msra.mxu0 %v1154
    %1239 = vmatprep.subr.bf16.mxu0 0
    %1240 = vmatpush2.bf16.msra.mxu0 %v1153
    %1241 = vmatprep.mubr.bf16.mxu0 %v762
    %1242 = vmatmul.mubr.bf16.gmra.mxu0 %v761
    %v1243 = vpop.f32.mrf.mxu0
    %v1244 = vadd.f32 0.0, %v1243
    %v1245 = vpop.f32.mrf.mxu0
    %v1246 = vpop.f32.mrf.mxu0
    %v1247 = vadd.f32 0.0, %v1246
    %v1248 = vpop.f32.mrf.mxu0
    %1249 = vmatprep.mubr.bf16.mxu0 %v766
    %1250 = vmatmul.mubr.bf16.gmra.mxu0 %v765
    %v1251 = vpop.f32.mrf.mxu0
    %v1252 = vadd.f32 0.0, %v1251
    %v1253 = vpop.f32.mrf.mxu0
    %v1254 = vpop.f32.mrf.mxu0
    %v1255 = vadd.f32 0.0, %v1254
    %v1256 = vpop.f32.mrf.mxu0
    %1257 = vmatprep.mubr.bf16.mxu0 %v770
    %1258 = vmatmul.mubr.bf16.gmra.mxu0 %v769
    %v1259 = vpop.f32.mrf.mxu0
    %v1260 = vadd.f32 0.0, %v1259
    %v1261 = vpop.f32.mrf.mxu0
    %v1262 = vpop.f32.mrf.mxu0
    %v1263 = vadd.f32 0.0, %v1262
    %v1264 = vpop.f32.mrf.mxu0
    %1265 = vmatprep.mubr.bf16.mxu0 %v774
    %1266 = vmatmul.mubr.bf16.gmra.mxu0 %v773
    %v1267 = vpop.f32.mrf.mxu0
    %v1268 = vadd.f32 0.0, %v1267
    %v1269 = vpop.f32.mrf.mxu0
    %v1270 = vpop.f32.mrf.mxu0
    %v1271 = vadd.f32 0.0, %v1270
    %v1272 = vpop.f32.mrf.mxu0
    %1273 = vmatprep.mubr.bf16.mxu0 %v778
    %1274 = vmatmul.mubr.bf16.gmra.mxu0 %v777
    %v1275 = vpop.f32.mrf.mxu0
    %v1276 = vadd.f32 0.0, %v1275
    %v1277 = vpop.f32.mrf.mxu0
    %v1278 = vpop.f32.mrf.mxu0
    %v1279 = vadd.f32 0.0, %v1278
    %v1280 = vpop.f32.mrf.mxu0
    %1281 = vmatprep.mubr.bf16.mxu0 %v782
    %1282 = vmatmul.mubr.bf16.gmra.mxu0 %v781
    %v1283 = vpop.f32.mrf.mxu0
    %v1284 = vadd.f32 0.0, %v1283
    %v1285 = vpop.f32.mrf.mxu0
    %v1286 = vpop.f32.mrf.mxu0
    %v1287 = vadd.f32 0.0, %v1286
    %v1288 = vpop.f32.mrf.mxu0
    %1289 = vmatprep.mubr.bf16.mxu0 %v786
    %1290 = vmatmul.mubr.bf16.gmra.mxu0 %v785
    %v1291 = vpop.f32.mrf.mxu0
    %v1292 = vadd.f32 0.0, %v1291
    %v1293 = vpop.f32.mrf.mxu0
    %v1294 = vpop.f32.mrf.mxu0
    %v1295 = vadd.f32 0.0, %v1294
    %v1296 = vpop.f32.mrf.mxu0
    %1297 = vmatprep.mubr.bf16.mxu0 %v790
    %1298 = vmatmul.mubr.bf16.gmra.mxu0 %v789
    %v1299 = vpop.f32.mrf.mxu0
    %v1300 = vadd.f32 0.0, %v1299
    %v1301 = vpop.f32.mrf.mxu0
    %v1302 = vpop.f32.mrf.mxu0
    %v1303 = vadd.f32 0.0, %v1302
    %v1304 = vpop.f32.mrf.mxu0
    %1305 = vmatprep.mubr.bf16.mxu0 %v794
    %1306 = vmatmul.mubr.bf16.gmra.mxu0 %v793
    %v1307 = vpop.f32.mrf.mxu0
    %v1308 = vadd.f32 0.0, %v1307
    %v1309 = vpop.f32.mrf.mxu0
    %v1310 = vpop.f32.mrf.mxu0
    %v1311 = vadd.f32 0.0, %v1310
    %v1312 = vpop.f32.mrf.mxu0
    %1313 = vmatprep.mubr.bf16.mxu0 %v798
    %1314 = vmatmul.mubr.bf16.gmra.mxu0 %v797
    %v1315 = vpop.f32.mrf.mxu0
    %v1316 = vadd.f32 0.0, %v1315
    %v1317 = vpop.f32.mrf.mxu0
    %v1318 = vpop.f32.mrf.mxu0
    %v1319 = vadd.f32 0.0, %v1318
    %v1320 = vpop.f32.mrf.mxu0
    %1321 = vmatprep.mubr.bf16.mxu0 %v802
    %1322 = vmatmul.mubr.bf16.gmra.mxu0 %v801
    %v1323 = vpop.f32.mrf.mxu0
    %v1324 = vadd.f32 0.0, %v1323
    %v1325 = vpop.f32.mrf.mxu0
    %v1326 = vpop.f32.mrf.mxu0
    %v1327 = vadd.f32 0.0, %v1326
    %v1328 = vpop.f32.mrf.mxu0
    %1329 = vmatprep.mubr.bf16.mxu0 %v806
    %1330 = vmatmul.mubr.bf16.gmra.mxu0 %v805
    %v1331 = vpop.f32.mrf.mxu0
    %v1332 = vadd.f32 0.0, %v1331
    %v1333 = vpop.f32.mrf.mxu0
    %v1334 = vpop.f32.mrf.mxu0
    %v1335 = vadd.f32 0.0, %v1334
    %v1336 = vpop.f32.mrf.mxu0
    %1337 = vmatprep.mubr.bf16.mxu0 %v810
    %1338 = vmatmul.mubr.bf16.gmra.mxu0 %v809
    %v1339 = vpop.f32.mrf.mxu0
    %v1340 = vadd.f32 0.0, %v1339
    %v1341 = vpop.f32.mrf.mxu0
    %v1342 = vpop.f32.mrf.mxu0
    %v1343 = vadd.f32 0.0, %v1342
    %v1344 = vpop.f32.mrf.mxu0
    %1345 = vmatprep.mubr.bf16.mxu0 %v814
    %1346 = vmatmul.mubr.bf16.gmra.mxu0 %v813
    %v1347 = vpop.f32.mrf.mxu0
    %v1348 = vadd.f32 0.0, %v1347
    %v1349 = vpop.f32.mrf.mxu0
    %v1350 = vpop.f32.mrf.mxu0
    %v1351 = vadd.f32 0.0, %v1350
    %v1352 = vpop.f32.mrf.mxu0
    %1353 = vmatprep.mubr.bf16.mxu0 %v818
    %1354 = vmatmul.mubr.bf16.gmra.mxu0 %v817
    %v1355 = vpop.f32.mrf.mxu0
    %v1356 = vadd.f32 0.0, %v1355
    %v1357 = vpop.f32.mrf.mxu0
    %v1358 = vpop.f32.mrf.mxu0
    %v1359 = vadd.f32 0.0, %v1358
    %v1360 = vpop.f32.mrf.mxu0
    %1361 = vmatprep.mubr.bf16.mxu0 %v822
    %1362 = vmatmul.mubr.bf16.gmra.mxu0 %v821
    %v1363 = vpop.f32.mrf.mxu0
    %v1364 = vadd.f32 0.0, %v1363
    %v1365 = vpop.f32.mrf.mxu0
    %v1366 = vpop.f32.mrf.mxu0
    %v1367 = vadd.f32 0.0, %v1366
    %v1368 = vpop.f32.mrf.mxu0
    %1369 = vmatprep.mubr.bf16.mxu0 %v826
    %1370 = vmatmul.mubr.bf16.gmra.mxu0 %v825
    %v1371 = vpop.f32.mrf.mxu0
    %v1372 = vadd.f32 0.0, %v1371
    %v1373 = vpop.f32.mrf.mxu0
    %v1374 = vpop.f32.mrf.mxu0
    %v1375 = vadd.f32 0.0, %v1374
    %v1376 = vpop.f32.mrf.mxu0
    %1377 = vmatprep.mubr.bf16.mxu0 %v830
    %1378 = vmatmul.mubr.bf16.gmra.mxu0 %v829
    %v1379 = vpop.f32.mrf.mxu0
    %v1380 = vadd.f32 0.0, %v1379
    %v1381 = vpop.f32.mrf.mxu0
    %v1382 = vpop.f32.mrf.mxu0
    %v1383 = vadd.f32 0.0, %v1382
    %v1384 = vpop.f32.mrf.mxu0
    %1385 = vmatprep.mubr.bf16.mxu0 %v834
    %1386 = vmatmul.mubr.bf16.gmra.mxu0 %v833
    %v1387 = vpop.f32.mrf.mxu0
    %v1388 = vadd.f32 0.0, %v1387
    %v1389 = vpop.f32.mrf.mxu0
    %v1390 = vpop.f32.mrf.mxu0
    %v1391 = vadd.f32 0.0, %v1390
    %v1392 = vpop.f32.mrf.mxu0
    %1393 = vmatprep.mubr.bf16.mxu0 %v838
    %1394 = vmatmul.mubr.bf16.gmra.mxu0 %v837
    %v1395 = vpop.f32.mrf.mxu0
    %v1396 = vadd.f32 0.0, %v1395
    %v1397 = vpop.f32.mrf.mxu0
    %v1398 = vpop.f32.mrf.mxu0
    %v1399 = vadd.f32 0.0, %v1398
    %v1400 = vpop.f32.mrf.mxu0
    %1401 = vmatprep.mubr.bf16.mxu0 %v842
    %1402 = vmatmul.mubr.bf16.gmra.mxu0 %v841
    %v1403 = vpop.f32.mrf.mxu0
    %v1404 = vadd.f32 0.0, %v1403
    %v1405 = vpop.f32.mrf.mxu0
    %v1406 = vpop.f32.mrf.mxu0
    %v1407 = vadd.f32 0.0, %v1406
    %v1408 = vpop.f32.mrf.mxu0
    %1409 = vmatprep.mubr.bf16.mxu0 %v846
    %1410 = vmatmul.mubr.bf16.gmra.mxu0 %v845
    %v1411 = vpop.f32.mrf.mxu0
    %v1412 = vadd.f32 0.0, %v1411
    %v1413 = vpop.f32.mrf.mxu0
    %v1414 = vpop.f32.mrf.mxu0
    %v1415 = vadd.f32 0.0, %v1414
    %v1416 = vpop.f32.mrf.mxu0
    %1417 = vmatprep.mubr.bf16.mxu0 %v850
    %1418 = vmatmul.mubr.bf16.gmra.mxu0 %v849
    %v1419 = vpop.f32.mrf.mxu0
    %v1420 = vadd.f32 0.0, %v1419
    %v1421 = vpop.f32.mrf.mxu0
    %v1422 = vpop.f32.mrf.mxu0
    %v1423 = vadd.f32 0.0, %v1422
    %v1424 = vpop.f32.mrf.mxu0
    %1425 = vmatprep.mubr.bf16.mxu0 %v854
    %1426 = vmatmul.mubr.bf16.gmra.mxu0 %v853
    %v1427 = vpop.f32.mrf.mxu0
    %v1428 = vadd.f32 0.0, %v1427
    %v1429 = vpop.f32.mrf.mxu0
    %v1430 = vpop.f32.mrf.mxu0
    %v1431 = vadd.f32 0.0, %v1430
    %v1432 = vpop.f32.mrf.mxu0
    %1433 = vmatprep.mubr.bf16.mxu0 %v858
    %1434 = vmatmul.mubr.bf16.gmra.mxu0 %v857
    %v1435 = vpop.f32.mrf.mxu0
    %v1436 = vadd.f32 0.0, %v1435
    %v1437 = vpop.f32.mrf.mxu0
    %v1438 = vpop.f32.mrf.mxu0
    %v1439 = vadd.f32 0.0, %v1438
    %v1440 = vpop.f32.mrf.mxu0
    %1441 = vmatprep.mubr.bf16.mxu0 %v862
    %1442 = vmatmul.mubr.bf16.gmra.mxu0 %v861
    %v1443 = vpop.f32.mrf.mxu0
    %v1444 = vadd.f32 0.0, %v1443
    %v1445 = vpop.f32.mrf.mxu0
    %v1446 = vpop.f32.mrf.mxu0
    %v1447 = vadd.f32 0.0, %v1446
    %v1448 = vpop.f32.mrf.mxu0
    %1449 = vmatprep.mubr.bf16.mxu0 %v866
    %1450 = vmatmul.mubr.bf16.gmra.mxu0 %v865
    %v1451 = vpop.f32.mrf.mxu0
    %v1452 = vadd.f32 0.0, %v1451
    %v1453 = vpop.f32.mrf.mxu0
    %v1454 = vpop.f32.mrf.mxu0
    %v1455 = vadd.f32 0.0, %v1454
    %v1456 = vpop.f32.mrf.mxu0
    %1457 = vmatprep.mubr.bf16.mxu0 %v870
    %1458 = vmatmul.mubr.bf16.gmra.mxu0 %v869
    %v1459 = vpop.f32.mrf.mxu0
    %v1460 = vadd.f32 0.0, %v1459
    %v1461 = vpop.f32.mrf.mxu0
    %v1462 = vpop.f32.mrf.mxu0
    %v1463 = vadd.f32 0.0, %v1462
    %v1464 = vpop.f32.mrf.mxu0
    %1465 = vmatprep.mubr.bf16.mxu0 %v874
    %1466 = vmatmul.mubr.bf16.gmra.mxu0 %v873
    %v1467 = vpop.f32.mrf.mxu0
    %v1468 = vadd.f32 0.0, %v1467
    %v1469 = vpop.f32.mrf.mxu0
    %v1470 = vpop.f32.mrf.mxu0
    %v1471 = vadd.f32 0.0, %v1470
    %v1472 = vpop.f32.mrf.mxu0
    %1473 = vmatprep.mubr.bf16.mxu0 %v878
    %1474 = vmatmul.mubr.bf16.gmra.mxu0 %v877
    %v1475 = vpop.f32.mrf.mxu0
    %v1476 = vadd.f32 0.0, %v1475
    %v1477 = vpop.f32.mrf.mxu0
    %v1478 = vpop.f32.mrf.mxu0
    %v1479 = vadd.f32 0.0, %v1478
    %v1480 = vpop.f32.mrf.mxu0
    %1481 = vmatprep.mubr.bf16.mxu0 %v882
    %1482 = vmatmul.mubr.bf16.gmra.mxu0 %v881
    %v1483 = vpop.f32.mrf.mxu0
    %v1484 = vadd.f32 0.0, %v1483
    %v1485 = vpop.f32.mrf.mxu0
    %v1486 = vpop.f32.mrf.mxu0
    %v1487 = vadd.f32 0.0, %v1486
    %v1488 = vpop.f32.mrf.mxu0
    %1489 = vmatprep.mubr.bf16.mxu0 %v886
    %1490 = vmatmul.mubr.bf16.gmra.mxu0 %v885
    %v1491 = vpop.f32.mrf.mxu0
    %v1492 = vadd.f32 0.0, %v1491
    %v1493 = vpop.f32.mrf.mxu0
    %v1494 = vpop.f32.mrf.mxu0
    %v1495 = vadd.f32 0.0, %v1494
    %v1496 = vpop.f32.mrf.mxu0
    %1497 = vdwg.mxu0
    %1498 = vmatprep.subr.bf16.mxu0 0
    %1499 = vmatpush1.bf16.msra.mxu0 %v1168
    %1500 = vmatprep.subr.bf16.mxu0 0
    %1501 = vmatpush1.bf16.msra.mxu0 %v1167
    %1502 = vmatprep.subr.bf16.mxu0 0
    %1503 = vmatpush1.bf16.msra.mxu0 %v1166
    %1504 = vmatprep.subr.bf16.mxu0 0
    %1505 = vmatpush1.bf16.msra.mxu0 %v1165
    %1506 = vmatprep.subr.bf16.mxu0 0
    %1507 = vmatpush1.bf16.msra.mxu0 %v1164
    %1508 = vmatprep.subr.bf16.mxu0 0
    %1509 = vmatpush1.bf16.msra.mxu0 %v1163
    %1510 = vmatprep.subr.bf16.mxu0 0
    %1511 = vmatpush1.bf16.msra.mxu0 %v1162
    %1512 = vmatprep.subr.bf16.mxu0 0
    %1513 = vmatpush1.bf16.msra.mxu0 %v1161
    %1514 = vmatprep.subr.bf16.mxu0 0
    %1515 = vmatpush2.bf16.msra.mxu0 %v1176
    %1516 = vmatprep.subr.bf16.mxu0 0
    %1517 = vmatpush2.bf16.msra.mxu0 %v1175
    %1518 = vmatprep.subr.bf16.mxu0 0
    %1519 = vmatpush2.bf16.msra.mxu0 %v1174
    %1520 = vmatprep.subr.bf16.mxu0 0
    %1521 = vmatpush2.bf16.msra.mxu0 %v1173
    %1522 = vmatprep.subr.bf16.mxu0 0
    %1523 = vmatpush2.bf16.msra.mxu0 %v1172
    %1524 = vmatprep.subr.bf16.mxu0 0
    %1525 = vmatpush2.bf16.msra.mxu0 %v1171
    %1526 = vmatprep.subr.bf16.mxu0 0
    %1527 = vmatpush2.bf16.msra.mxu0 %v1170
    %1528 = vmatprep.subr.bf16.mxu0 0
    %1529 = vmatpush2.bf16.msra.mxu0 %v1169
    %1530 = vmatprep.mubr.bf16.mxu0 %v764
    %1531 = vmatmul.mubr.bf16.gmra.mxu0 %v763
    %v1532 = vpop.f32.mrf.mxu0
    %v1533 = vadd.f32 %v1244, %v1532
    %v1534 = vpop.f32.mrf.mxu0
    %v1535 = vpop.f32.mrf.mxu0
    %v1536 = vadd.f32 %v1247, %v1535
    %v1537 = vpop.f32.mrf.mxu0
    %1538 = vmatprep.mubr.bf16.mxu0 %v768
    %1539 = vmatmul.mubr.bf16.gmra.mxu0 %v767
    %v1540 = vpop.f32.mrf.mxu0
    %v1541 = vadd.f32 %v1252, %v1540
    %v1542 = vpop.f32.mrf.mxu0
    %v1543 = vpop.f32.mrf.mxu0
    %v1544 = vadd.f32 %v1255, %v1543
    %v1545 = vpop.f32.mrf.mxu0
    %1546 = vmatprep.mubr.bf16.mxu0 %v772
    %1547 = vmatmul.mubr.bf16.gmra.mxu0 %v771
    %v1548 = vpop.f32.mrf.mxu0
    %v1549 = vadd.f32 %v1260, %v1548
    %v1550 = vpop.f32.mrf.mxu0
    %v1551 = vpop.f32.mrf.mxu0
    %v1552 = vadd.f32 %v1263, %v1551
    %v1553 = vpop.f32.mrf.mxu0
    %1554 = vmatprep.mubr.bf16.mxu0 %v776
    %1555 = vmatmul.mubr.bf16.gmra.mxu0 %v775
    %v1556 = vpop.f32.mrf.mxu0
    %v1557 = vadd.f32 %v1268, %v1556
    %v1558 = vpop.f32.mrf.mxu0
    %v1559 = vpop.f32.mrf.mxu0
    %v1560 = vadd.f32 %v1271, %v1559
    %v1561 = vpop.f32.mrf.mxu0
    %1562 = vmatprep.mubr.bf16.mxu0 %v780
    %1563 = vmatmul.mubr.bf16.gmra.mxu0 %v779
    %v1564 = vpop.f32.mrf.mxu0
    %v1565 = vadd.f32 %v1276, %v1564
    %v1566 = vpop.f32.mrf.mxu0
    %v1567 = vpop.f32.mrf.mxu0
    %v1568 = vadd.f32 %v1279, %v1567
    %v1569 = vpop.f32.mrf.mxu0
    %1570 = vmatprep.mubr.bf16.mxu0 %v784
    %1571 = vmatmul.mubr.bf16.gmra.mxu0 %v783
    %v1572 = vpop.f32.mrf.mxu0
    %v1573 = vadd.f32 %v1284, %v1572
    %v1574 = vpop.f32.mrf.mxu0
    %v1575 = vpop.f32.mrf.mxu0
    %v1576 = vadd.f32 %v1287, %v1575
    %v1577 = vpop.f32.mrf.mxu0
    %1578 = vmatprep.mubr.bf16.mxu0 %v788
    %1579 = vmatmul.mubr.bf16.gmra.mxu0 %v787
    %v1580 = vpop.f32.mrf.mxu0
    %v1581 = vadd.f32 %v1292, %v1580
    %v1582 = vpop.f32.mrf.mxu0
    %v1583 = vpop.f32.mrf.mxu0
    %v1584 = vadd.f32 %v1295, %v1583
    %v1585 = vpop.f32.mrf.mxu0
    %1586 = vmatprep.mubr.bf16.mxu0 %v792
    %1587 = vmatmul.mubr.bf16.gmra.mxu0 %v791
    %v1588 = vpop.f32.mrf.mxu0
    %v1589 = vadd.f32 %v1300, %v1588
    %v1590 = vpop.f32.mrf.mxu0
    %v1591 = vpop.f32.mrf.mxu0
    %v1592 = vadd.f32 %v1303, %v1591
    %v1593 = vpop.f32.mrf.mxu0
    %1594 = vmatprep.mubr.bf16.mxu0 %v796
    %1595 = vmatmul.mubr.bf16.gmra.mxu0 %v795
    %v1596 = vpop.f32.mrf.mxu0
    %v1597 = vadd.f32 %v1308, %v1596
    %v1598 = vpop.f32.mrf.mxu0
    %v1599 = vpop.f32.mrf.mxu0
    %v1600 = vadd.f32 %v1311, %v1599
    %v1601 = vpop.f32.mrf.mxu0
    %1602 = vmatprep.mubr.bf16.mxu0 %v800
    %1603 = vmatmul.mubr.bf16.gmra.mxu0 %v799
    %v1604 = vpop.f32.mrf.mxu0
    %v1605 = vadd.f32 %v1316, %v1604
    %v1606 = vpop.f32.mrf.mxu0
    %v1607 = vpop.f32.mrf.mxu0
    %v1608 = vadd.f32 %v1319, %v1607
    %v1609 = vpop.f32.mrf.mxu0
    %1610 = vmatprep.mubr.bf16.mxu0 %v804
    %1611 = vmatmul.mubr.bf16.gmra.mxu0 %v803
    %v1612 = vpop.f32.mrf.mxu0
    %v1613 = vadd.f32 %v1324, %v1612
    %v1614 = vpop.f32.mrf.mxu0
    %v1615 = vpop.f32.mrf.mxu0
    %v1616 = vadd.f32 %v1327, %v1615
    %v1617 = vpop.f32.mrf.mxu0
    %1618 = vmatprep.mubr.bf16.mxu0 %v808
    %1619 = vmatmul.mubr.bf16.gmra.mxu0 %v807
    %v1620 = vpop.f32.mrf.mxu0
    %v1621 = vadd.f32 %v1332, %v1620
    %v1622 = vpop.f32.mrf.mxu0
    %v1623 = vpop.f32.mrf.mxu0
    %v1624 = vadd.f32 %v1335, %v1623
    %v1625 = vpop.f32.mrf.mxu0
    %1626 = vmatprep.mubr.bf16.mxu0 %v812
    %1627 = vmatmul.mubr.bf16.gmra.mxu0 %v811
    %v1628 = vpop.f32.mrf.mxu0
    %v1629 = vadd.f32 %v1340, %v1628
    %v1630 = vpop.f32.mrf.mxu0
    %v1631 = vpop.f32.mrf.mxu0
    %v1632 = vadd.f32 %v1343, %v1631
    %v1633 = vpop.f32.mrf.mxu0
    %1634 = vmatprep.mubr.bf16.mxu0 %v816
    %1635 = vmatmul.mubr.bf16.gmra.mxu0 %v815
    %v1636 = vpop.f32.mrf.mxu0
    %v1637 = vadd.f32 %v1348, %v1636
    %v1638 = vpop.f32.mrf.mxu0
    %v1639 = vpop.f32.mrf.mxu0
    %v1640 = vadd.f32 %v1351, %v1639
    %v1641 = vpop.f32.mrf.mxu0
    %1642 = vmatprep.mubr.bf16.mxu0 %v820
    %1643 = vmatmul.mubr.bf16.gmra.mxu0 %v819
    %v1644 = vpop.f32.mrf.mxu0
    %v1645 = vadd.f32 %v1356, %v1644
    %v1646 = vpop.f32.mrf.mxu0
    %v1647 = vpop.f32.mrf.mxu0
    %v1648 = vadd.f32 %v1359, %v1647
    %v1649 = vpop.f32.mrf.mxu0
    %1650 = vmatprep.mubr.bf16.mxu0 %v824
    %1651 = vmatmul.mubr.bf16.gmra.mxu0 %v823
    %v1652 = vpop.f32.mrf.mxu0
    %v1653 = vadd.f32 %v1364, %v1652
    %v1654 = vpop.f32.mrf.mxu0
    %v1655 = vpop.f32.mrf.mxu0
    %v1656 = vadd.f32 %v1367, %v1655
    %v1657 = vpop.f32.mrf.mxu0
    %1658 = vmatprep.mubr.bf16.mxu0 %v828
    %1659 = vmatmul.mubr.bf16.gmra.mxu0 %v827
    %v1660 = vpop.f32.mrf.mxu0
    %v1661 = vadd.f32 %v1372, %v1660
    %v1662 = vpop.f32.mrf.mxu0
    %v1663 = vpop.f32.mrf.mxu0
    %v1664 = vadd.f32 %v1375, %v1663
    %v1665 = vpop.f32.mrf.mxu0
    %1666 = vmatprep.mubr.bf16.mxu0 %v832
    %1667 = vmatmul.mubr.bf16.gmra.mxu0 %v831
    %v1668 = vpop.f32.mrf.mxu0
    %v1669 = vadd.f32 %v1380, %v1668
    %v1670 = vpop.f32.mrf.mxu0
    %v1671 = vpop.f32.mrf.mxu0
    %v1672 = vadd.f32 %v1383, %v1671
    %v1673 = vpop.f32.mrf.mxu0
    %1674 = vmatprep.mubr.bf16.mxu0 %v836
    %1675 = vmatmul.mubr.bf16.gmra.mxu0 %v835
    %v1676 = vpop.f32.mrf.mxu0
    %v1677 = vadd.f32 %v1388, %v1676
    %v1678 = vpop.f32.mrf.mxu0
    %v1679 = vpop.f32.mrf.mxu0
    %v1680 = vadd.f32 %v1391, %v1679
    %v1681 = vpop.f32.mrf.mxu0
    %1682 = vmatprep.mubr.bf16.mxu0 %v840
    %1683 = vmatmul.mubr.bf16.gmra.mxu0 %v839
    %v1684 = vpop.f32.mrf.mxu0
    %v1685 = vadd.f32 %v1396, %v1684
    %v1686 = vpop.f32.mrf.mxu0
    %v1687 = vpop.f32.mrf.mxu0
    %v1688 = vadd.f32 %v1399, %v1687
    %v1689 = vpop.f32.mrf.mxu0
    %1690 = vmatprep.mubr.bf16.mxu0 %v844
    %1691 = vmatmul.mubr.bf16.gmra.mxu0 %v843
    %v1692 = vpop.f32.mrf.mxu0
    %v1693 = vadd.f32 %v1404, %v1692
    %v1694 = vpop.f32.mrf.mxu0
    %v1695 = vpop.f32.mrf.mxu0
    %v1696 = vadd.f32 %v1407, %v1695
    %v1697 = vpop.f32.mrf.mxu0
    %1698 = vmatprep.mubr.bf16.mxu0 %v848
    %1699 = vmatmul.mubr.bf16.gmra.mxu0 %v847
    %v1700 = vpop.f32.mrf.mxu0
    %v1701 = vadd.f32 %v1412, %v1700
    %v1702 = vpop.f32.mrf.mxu0
    %v1703 = vpop.f32.mrf.mxu0
    %v1704 = vadd.f32 %v1415, %v1703
    %v1705 = vpop.f32.mrf.mxu0
    %1706 = vmatprep.mubr.bf16.mxu0 %v852
    %1707 = vmatmul.mubr.bf16.gmra.mxu0 %v851
    %v1708 = vpop.f32.mrf.mxu0
    %v1709 = vadd.f32 %v1420, %v1708
    %v1710 = vpop.f32.mrf.mxu0
    %v1711 = vpop.f32.mrf.mxu0
    %v1712 = vadd.f32 %v1423, %v1711
    %v1713 = vpop.f32.mrf.mxu0
    %1714 = vmatprep.mubr.bf16.mxu0 %v856
    %1715 = vmatmul.mubr.bf16.gmra.mxu0 %v855
    %v1716 = vpop.f32.mrf.mxu0
    %v1717 = vadd.f32 %v1428, %v1716
    %v1718 = vpop.f32.mrf.mxu0
    %v1719 = vpop.f32.mrf.mxu0
    %v1720 = vadd.f32 %v1431, %v1719
    %v1721 = vpop.f32.mrf.mxu0
    %1722 = vmatprep.mubr.bf16.mxu0 %v860
    %1723 = vmatmul.mubr.bf16.gmra.mxu0 %v859
    %v1724 = vpop.f32.mrf.mxu0
    %v1725 = vadd.f32 %v1436, %v1724
    %v1726 = vpop.f32.mrf.mxu0
    %v1727 = vpop.f32.mrf.mxu0
    %v1728 = vadd.f32 %v1439, %v1727
    %v1729 = vpop.f32.mrf.mxu0
    %1730 = vmatprep.mubr.bf16.mxu0 %v864
    %1731 = vmatmul.mubr.bf16.gmra.mxu0 %v863
    %v1732 = vpop.f32.mrf.mxu0
    %v1733 = vadd.f32 %v1444, %v1732
    %v1734 = vpop.f32.mrf.mxu0
    %v1735 = vpop.f32.mrf.mxu0
    %v1736 = vadd.f32 %v1447, %v1735
    %v1737 = vpop.f32.mrf.mxu0
    %1738 = vmatprep.mubr.bf16.mxu0 %v868
    %1739 = vmatmul.mubr.bf16.gmra.mxu0 %v867
    %v1740 = vpop.f32.mrf.mxu0
    %v1741 = vadd.f32 %v1452, %v1740
    %v1742 = vpop.f32.mrf.mxu0
    %v1743 = vpop.f32.mrf.mxu0
    %v1744 = vadd.f32 %v1455, %v1743
    %v1745 = vpop.f32.mrf.mxu0
    %1746 = vmatprep.mubr.bf16.mxu0 %v872
    %1747 = vmatmul.mubr.bf16.gmra.mxu0 %v871
    %v1748 = vpop.f32.mrf.mxu0
    %v1749 = vadd.f32 %v1460, %v1748
    %v1750 = vpop.f32.mrf.mxu0
    %v1751 = vpop.f32.mrf.mxu0
    %v1752 = vadd.f32 %v1463, %v1751
    %v1753 = vpop.f32.mrf.mxu0
    %1754 = vmatprep.mubr.bf16.mxu0 %v876
    %1755 = vmatmul.mubr.bf16.gmra.mxu0 %v875
    %v1756 = vpop.f32.mrf.mxu0
    %v1757 = vadd.f32 %v1468, %v1756
    %v1758 = vpop.f32.mrf.mxu0
    %v1759 = vpop.f32.mrf.mxu0
    %v1760 = vadd.f32 %v1471, %v1759
    %v1761 = vpop.f32.mrf.mxu0
    %1762 = vmatprep.mubr.bf16.mxu0 %v880
    %1763 = vmatmul.mubr.bf16.gmra.mxu0 %v879
    %v1764 = vpop.f32.mrf.mxu0
    %v1765 = vadd.f32 %v1476, %v1764
    %v1766 = vpop.f32.mrf.mxu0
    %v1767 = vpop.f32.mrf.mxu0
    %v1768 = vadd.f32 %v1479, %v1767
    %v1769 = vpop.f32.mrf.mxu0
    %1770 = vmatprep.mubr.bf16.mxu0 %v884
    %1771 = vmatmul.mubr.bf16.gmra.mxu0 %v883
    %v1772 = vpop.f32.mrf.mxu0
    %v1773 = vadd.f32 %v1484, %v1772
    %v1774 = vpop.f32.mrf.mxu0
    %v1775 = vpop.f32.mrf.mxu0
    %v1776 = vadd.f32 %v1487, %v1775
    %v1777 = vpop.f32.mrf.mxu0
    %1778 = vmatprep.mubr.bf16.mxu0 %v888
    %1779 = vmatmul.mubr.bf16.gmra.mxu0 %v887
    %v1780 = vpop.f32.mrf.mxu0
    %v1781 = vadd.f32 %v1492, %v1780
    %v1782 = vpop.f32.mrf.mxu0
    %v1783 = vpop.f32.mrf.mxu0
    %v1784 = vadd.f32 %v1495, %v1783
    %v1785 = vpop.f32.mrf.mxu0
    %1786 = vdwg.mxu0
    %v1787 = vadd.f32 %v121, %v1533
    %v1788 = vadd.f32 %v122, %v1536
    %v1789 = vadd.f32 %v123, %v1541
    %v1790 = vadd.f32 %v124, %v1544
    %v1791 = vadd.f32 %v125, %v1549
    %v1792 = vadd.f32 %v126, %v1552
    %v1793 = vadd.f32 %v127, %v1557
    %v1794 = vadd.f32 %v128, %v1560
    %v1795 = vadd.f32 %v129, %v1565
    %v1796 = vadd.f32 %v130, %v1568
    %v1797 = vadd.f32 %v131, %v1573
    %v1798 = vadd.f32 %v132, %v1576
    %v1799 = vadd.f32 %v133, %v1581
    %v1800 = vadd.f32 %v134, %v1584
    %v1801 = vadd.f32 %v135, %v1589
    %v1802 = vadd.f32 %v136, %v1592
    %v1803 = vadd.f32 %v137, %v1597
    %v1804 = vadd.f32 %v138, %v1600
    %v1805 = vadd.f32 %v139, %v1605
    %v1806 = vadd.f32 %v140, %v1608
    %v1807 = vadd.f32 %v141, %v1613
    %v1808 = vadd.f32 %v142, %v1616
    %v1809 = vadd.f32 %v143, %v1621
    %v1810 = vadd.f32 %v144, %v1624
    %v1811 = vadd.f32 %v145, %v1629
    %v1812 = vadd.f32 %v146, %v1632
    %v1813 = vadd.f32 %v147, %v1637
    %v1814 = vadd.f32 %v148, %v1640
    %v1815 = vadd.f32 %v149, %v1645
    %v1816 = vadd.f32 %v150, %v1648
    %v1817 = vadd.f32 %v151, %v1653
    %v1818 = vadd.f32 %v152, %v1656
    %v1819 = vadd.f32 %v153, %v1661
    %v1820 = vadd.f32 %v154, %v1664
    %v1821 = vadd.f32 %v155, %v1669
    %v1822 = vadd.f32 %v156, %v1672
    %v1823 = vadd.f32 %v157, %v1677
    %v1824 = vadd.f32 %v158, %v1680
    %v1825 = vadd.f32 %v159, %v1685
    %v1826 = vadd.f32 %v160, %v1688
    %v1827 = vadd.f32 %v161, %v1693
    %v1828 = vadd.f32 %v162, %v1696
    %v1829 = vadd.f32 %v163, %v1701
    %v1830 = vadd.f32 %v164, %v1704
    %v1831 = vadd.f32 %v165, %v1709
    %v1832 = vadd.f32 %v166, %v1712
    %v1833 = vadd.f32 %v167, %v1717
    %v1834 = vadd.f32 %v168, %v1720
    %v1835 = vadd.f32 %v169, %v1725
    %v1836 = vadd.f32 %v170, %v1728
    %v1837 = vadd.f32 %v171, %v1733
    %v1838 = vadd.f32 %v172, %v1736
    %v1839 = vadd.f32 %v173, %v1741
    %v1840 = vadd.f32 %v174, %v1744
    %v1841 = vadd.f32 %v175, %v1749
    %v1842 = vadd.f32 %v176, %v1752
    %v1843 = vadd.f32 %v177, %v1757
    %v1844 = vadd.f32 %v178, %v1760
    %v1845 = vadd.f32 %v179, %v1765
    %v1846 = vadd.f32 %v180, %v1768
    %v1847 = vadd.f32 %v181, %v1773
    %v1848 = vadd.f32 %v182, %v1776
    %v1849 = vadd.f32 %v183, %v1781
    %v1850 = vadd.f32 %v184, %v1784
    %1851 = vst [vmem:[#allocation2] sm:$0xff] %v1787
    %1852 = vst [vmem:[#allocation2 + $0x8] sm:$0xff] %v1788
    %1853 = vst [vmem:[#allocation2 + $0x10] sm:$0xff] %v1789
    %1854 = vst [vmem:[#allocation2 + $0x18] sm:$0xff] %v1790
    %1855 = vst [vmem:[#allocation2 + $0x20] sm:$0xff] %v1791
    %1856 = vst [vmem:[#allocation2 + $0x28] sm:$0xff] %v1792
    %1857 = vst [vmem:[#allocation2 + $0x30] sm:$0xff] %v1793
    %1858 = vst [vmem:[#allocation2 + $0x38] sm:$0xff] %v1794
    %1859 = vst [vmem:[#allocation2 + $0x40] sm:$0xff] %v1795
    %1860 = vst [vmem:[#allocation2 + $0x48] sm:$0xff] %v1796
    %1861 = vst [vmem:[#allocation2 + $0x50] sm:$0xff] %v1797
    %1862 = vst [vmem:[#allocation2 + $0x58] sm:$0xff] %v1798
    %1863 = vst [vmem:[#allocation2 + $0x60] sm:$0xff] %v1799
    %1864 = vst [vmem:[#allocation2 + $0x68] sm:$0xff] %v1800
    %1865 = vst [vmem:[#allocation2 + $0x70] sm:$0xff] %v1801
    %1866 = vst [vmem:[#allocation2 + $0x78] sm:$0xff] %v1802
    %1867 = vst [vmem:[#allocation2 + $0x80] sm:$0xff] %v1803
    %1868 = vst [vmem:[#allocation2 + $0x88] sm:$0xff] %v1804
    %1869 = vst [vmem:[#allocation2 + $0x90] sm:$0xff] %v1805
    %1870 = vst [vmem:[#allocation2 + $0x98] sm:$0xff] %v1806
    %1871 = vst [vmem:[#allocation2 + $0xa0] sm:$0xff] %v1807
    %1872 = vst [vmem:[#allocation2 + $0xa8] sm:$0xff] %v1808
    %1873 = vst [vmem:[#allocation2 + $0xb0] sm:$0xff] %v1809
    %1874 = vst [vmem:[#allocation2 + $0xb8] sm:$0xff] %v1810
    %1875 = vst [vmem:[#allocation2 + $0xc0] sm:$0xff] %v1811
    %1876 = vst [vmem:[#allocation2 + $0xc8] sm:$0xff] %v1812
    %1877 = vst [vmem:[#allocation2 + $0xd0] sm:$0xff] %v1813
    %1878 = vst [vmem:[#allocation2 + $0xd8] sm:$0xff] %v1814
    %1879 = vst [vmem:[#allocation2 + $0xe0] sm:$0xff] %v1815
    %1880 = vst [vmem:[#allocation2 + $0xe8] sm:$0xff] %v1816
    %1881 = vst [vmem:[#allocation2 + $0xf0] sm:$0xff] %v1817
    %1882 = vst [vmem:[#allocation2 + $0xf8] sm:$0xff] %v1818
    %1883 = vst [vmem:[#allocation2 + $0x100] sm:$0xff] %v1819
    %1884 = vst [vmem:[#allocation2 + $0x108] sm:$0xff] %v1820
    %1885 = vst [vmem:[#allocation2 + $0x110] sm:$0xff] %v1821
    %1886 = vst [vmem:[#allocation2 + $0x118] sm:$0xff] %v1822
    %1887 = vst [vmem:[#allocation2 + $0x120] sm:$0xff] %v1823
    %1888 = vst [vmem:[#allocation2 + $0x128] sm:$0xff] %v1824
    %1889 = vst [vmem:[#allocation2 + $0x130] sm:$0xff] %v1825
    %1890 = vst [vmem:[#allocation2 + $0x138] sm:$0xff] %v1826
    %1891 = vst [vmem:[#allocation2 + $0x140] sm:$0xff] %v1827
    %1892 = vst [vmem:[#allocation2 + $0x148] sm:$0xff] %v1828
    %1893 = vst [vmem:[#allocation2 + $0x150] sm:$0xff] %v1829
    %1894 = vst [vmem:[#allocation2 + $0x158] sm:$0xff] %v1830
    %1895 = vst [vmem:[#allocation2 + $0x160] sm:$0xff] %v1831
    %1896 = vst [vmem:[#allocation2 + $0x168] sm:$0xff] %v1832
    %1897 = vst [vmem:[#allocation2 + $0x170] sm:$0xff] %v1833
    %1898 = vst [vmem:[#allocation2 + $0x178] sm:$0xff] %v1834
    %1899 = vst [vmem:[#allocation2 + $0x180] sm:$0xff] %v1835
    %1900 = vst [vmem:[#allocation2 + $0x188] sm:$0xff] %v1836
    %1901 = vst [vmem:[#allocation2 + $0x190] sm:$0xff] %v1837
    %1902 = vst [vmem:[#allocation2 + $0x198] sm:$0xff] %v1838
    %1903 = vst [vmem:[#allocation2 + $0x1a0] sm:$0xff] %v1839
    %1904 = vst [vmem:[#allocation2 + $0x1a8] sm:$0xff] %v1840
    %1905 = vst [vmem:[#allocation2 + $0x1b0] sm:$0xff] %v1841
    %1906 = vst [vmem:[#allocation2 + $0x1b8] sm:$0xff] %v1842
    %1907 = vst [vmem:[#allocation2 + $0x1c0] sm:$0xff] %v1843
    %1908 = vst [vmem:[#allocation2 + $0x1c8] sm:$0xff] %v1844
    %1909 = vst [vmem:[#allocation2 + $0x1d0] sm:$0xff] %v1845
    %1910 = vst [vmem:[#allocation2 + $0x1d8] sm:$0xff] %v1846
    %1911 = vst [vmem:[#allocation2 + $0x1e0] sm:$0xff] %v1847
    %1912 = vst [vmem:[#allocation2 + $0x1e8] sm:$0xff] %v1848
    %1913 = vst [vmem:[#allocation2 + $0x1f0] sm:$0xff] %v1849
    %1914 = vst [vmem:[#allocation2 + $0x1f8] sm:$0xff] %v1850
    // Predicated region
    $region38: #{tpu_custom_call.1} parent=1 // pred_check
      %p1915 = pneg %p53
    $region39: #{tpu_custom_call.1} parent=1 // pred_check_branch
      %1917 = sbr.rel (%p1915) target = $region41
    $region40: #{tpu_custom_call.1} parent=1 // pred_region
      %v1918 = vld [vmem:[#allocation2] sm:$0xff]
      %v1919 = vld [vmem:[#allocation2 + $0x8] sm:$0xff]
      %v1920 = vld [vmem:[#allocation2 + $0x10] sm:$0xff]
      %v1921 = vld [vmem:[#allocation2 + $0x18] sm:$0xff]
      %v1922 = vld [vmem:[#allocation2 + $0x20] sm:$0xff]
      %v1923 = vld [vmem:[#allocation2 + $0x28] sm:$0xff]
      %v1924 = vld [vmem:[#allocation2 + $0x30] sm:$0xff]
      %v1925 = vld [vmem:[#allocation2 + $0x38] sm:$0xff]
      %v1926 = vld [vmem:[#allocation2 + $0x40] sm:$0xff]
      %v1927 = vld [vmem:[#allocation2 + $0x48] sm:$0xff]
      %v1928 = vld [vmem:[#allocation2 + $0x50] sm:$0xff]
      %v1929 = vld [vmem:[#allocation2 + $0x58] sm:$0xff]
      %v1930 = vld [vmem:[#allocation2 + $0x60] sm:$0xff]
      %v1931 = vld [vmem:[#allocation2 + $0x68] sm:$0xff]
      %v1932 = vld [vmem:[#allocation2 + $0x70] sm:$0xff]
      %v1933 = vld [vmem:[#allocation2 + $0x78] sm:$0xff]
      %v1934 = vld [vmem:[#allocation2 + $0x80] sm:$0xff]
      %v1935 = vld [vmem:[#allocation2 + $0x88] sm:$0xff]
      %v1936 = vld [vmem:[#allocation2 + $0x90] sm:$0xff]
      %v1937 = vld [vmem:[#allocation2 + $0x98] sm:$0xff]
      %v1938 = vld [vmem:[#allocation2 + $0xa0] sm:$0xff]
      %v1939 = vld [vmem:[#allocation2 + $0xa8] sm:$0xff]
      %v1940 = vld [vmem:[#allocation2 + $0xb0] sm:$0xff]
      %v1941 = vld [vmem:[#allocation2 + $0xb8] sm:$0xff]
      %v1942 = vld [vmem:[#allocation2 + $0xc0] sm:$0xff]
      %v1943 = vld [vmem:[#allocation2 + $0xc8] sm:$0xff]
      %v1944 = vld [vmem:[#allocation2 + $0xd0] sm:$0xff]
      %v1945 = vld [vmem:[#allocation2 + $0xd8] sm:$0xff]
      %v1946 = vld [vmem:[#allocation2 + $0xe0] sm:$0xff]
      %v1947 = vld [vmem:[#allocation2 + $0xe8] sm:$0xff]
      %v1948 = vld [vmem:[#allocation2 + $0xf0] sm:$0xff]
      %v1949 = vld [vmem:[#allocation2 + $0xf8] sm:$0xff]
      %v1950 = vld [vmem:[#allocation2 + $0x100] sm:$0xff]
      %v1951 = vld [vmem:[#allocation2 + $0x108] sm:$0xff]
      %v1952 = vld [vmem:[#allocation2 + $0x110] sm:$0xff]
      %v1953 = vld [vmem:[#allocation2 + $0x118] sm:$0xff]
      %v1954 = vld [vmem:[#allocation2 + $0x120] sm:$0xff]
      %v1955 = vld [vmem:[#allocation2 + $0x128] sm:$0xff]
      %v1956 = vld [vmem:[#allocation2 + $0x130] sm:$0xff]
      %v1957 = vld [vmem:[#allocation2 + $0x138] sm:$0xff]
      %v1958 = vld [vmem:[#allocation2 + $0x140] sm:$0xff]
      %v1959 = vld [vmem:[#allocation2 + $0x148] sm:$0xff]
      %v1960 = vld [vmem:[#allocation2 + $0x150] sm:$0xff]
      %v1961 = vld [vmem:[#allocation2 + $0x158] sm:$0xff]
      %v1962 = vld [vmem:[#allocation2 + $0x160] sm:$0xff]
      %v1963 = vld [vmem:[#allocation2 + $0x168] sm:$0xff]
      %v1964 = vld [vmem:[#allocation2 + $0x170] sm:$0xff]
      %v1965 = vld [vmem:[#allocation2 + $0x178] sm:$0xff]
      %v1966 = vld [vmem:[#allocation2 + $0x180] sm:$0xff]
      %v1967 = vld [vmem:[#allocation2 + $0x188] sm:$0xff]
      %v1968 = vld [vmem:[#allocation2 + $0x190] sm:$0xff]
      %v1969 = vld [vmem:[#allocation2 + $0x198] sm:$0xff]
      %v1970 = vld [vmem:[#allocation2 + $0x1a0] sm:$0xff]
      %v1971 = vld [vmem:[#allocation2 + $0x1a8] sm:$0xff]
      %v1972 = vld [vmem:[#allocation2 + $0x1b0] sm:$0xff]
      %v1973 = vld [vmem:[#allocation2 + $0x1b8] sm:$0xff]
      %v1974 = vld [vmem:[#allocation2 + $0x1c0] sm:$0xff]
      %v1975 = vld [vmem:[#allocation2 + $0x1c8] sm:$0xff]
      %v1976 = vld [vmem:[#allocation2 + $0x1d0] sm:$0xff]
      %v1977 = vld [vmem:[#allocation2 + $0x1d8] sm:$0xff]
      %v1978 = vld [vmem:[#allocation2 + $0x1e0] sm:$0xff]
      %v1979 = vld [vmem:[#allocation2 + $0x1e8] sm:$0xff]
      %v1980 = vld [vmem:[#allocation2 + $0x1f0] sm:$0xff]
      %v1981 = vld [vmem:[#allocation2 + $0x1f8] sm:$0xff]
      %v1982 = vld [vmem:[%s3] sm:$0xff]
      %v1983 = vld [vmem:[%s3 + $0x8] sm:$0xff]
      %v1984 = vld [vmem:[%s3 + $0x10] sm:$0xff]
      %v1985 = vld [vmem:[%s3 + $0x18] sm:$0xff]
      %v1986 = vld [vmem:[%s3 + $0x20] sm:$0xff]
      %v1987 = vld [vmem:[%s3 + $0x28] sm:$0xff]
      %v1988 = vld [vmem:[%s3 + $0x30] sm:$0xff]
      %v1989 = vld [vmem:[%s3 + $0x38] sm:$0xff]
      %v1990 = vld [vmem:[%s3 + $0x40] sm:$0xff]
      %v1991 = vld [vmem:[%s3 + $0x48] sm:$0xff]
      %v1992 = vld [vmem:[%s3 + $0x50] sm:$0xff]
      %v1993 = vld [vmem:[%s3 + $0x58] sm:$0xff]
      %v1994 = vld [vmem:[%s3 + $0x60] sm:$0xff]
      %v1995 = vld [vmem:[%s3 + $0x68] sm:$0xff]
      %v1996 = vld [vmem:[%s3 + $0x70] sm:$0xff]
      %v1997 = vld [vmem:[%s3 + $0x78] sm:$0xff]
      %v1998 = vld [vmem:[%s3 + $0x80] sm:$0xff]
      %v1999 = vld [vmem:[%s3 + $0x88] sm:$0xff]
      %v2000 = vld [vmem:[%s3 + $0x90] sm:$0xff]
      %v2001 = vld [vmem:[%s3 + $0x98] sm:$0xff]
      %v2002 = vld [vmem:[%s3 + $0xa0] sm:$0xff]
      %v2003 = vld [vmem:[%s3 + $0xa8] sm:$0xff]
      %v2004 = vld [vmem:[%s3 + $0xb0] sm:$0xff]
      %v2005 = vld [vmem:[%s3 + $0xb8] sm:$0xff]
      %v2006 = vld [vmem:[%s3 + $0xc0] sm:$0xff]
      %v2007 = vld [vmem:[%s3 + $0xc8] sm:$0xff]
      %v2008 = vld [vmem:[%s3 + $0xd0] sm:$0xff]
      %v2009 = vld [vmem:[%s3 + $0xd8] sm:$0xff]
      %v2010 = vld [vmem:[%s3 + $0xe0] sm:$0xff]
      %v2011 = vld [vmem:[%s3 + $0xe8] sm:$0xff]
      %v2012 = vld [vmem:[%s3 + $0xf0] sm:$0xff]
      %v2013 = vld [vmem:[%s3 + $0xf8] sm:$0xff]
      %v2014 = vld [vmem:[%s3 + $0x100] sm:$0xff]
      %v2015 = vld [vmem:[%s3 + $0x108] sm:$0xff]
      %v2016 = vld [vmem:[%s3 + $0x110] sm:$0xff]
      %v2017 = vld [vmem:[%s3 + $0x118] sm:$0xff]
      %v2018 = vld [vmem:[%s3 + $0x120] sm:$0xff]
      %v2019 = vld [vmem:[%s3 + $0x128] sm:$0xff]
      %v2020 = vld [vmem:[%s3 + $0x130] sm:$0xff]
      %v2021 = vld [vmem:[%s3 + $0x138] sm:$0xff]
      %v2022 = vld [vmem:[%s3 + $0x140] sm:$0xff]
      %v2023 = vld [vmem:[%s3 + $0x148] sm:$0xff]
      %v2024 = vld [vmem:[%s3 + $0x150] sm:$0xff]
      %v2025 = vld [vmem:[%s3 + $0x158] sm:$0xff]
      %v2026 = vld [vmem:[%s3 + $0x160] sm:$0xff]
      %v2027 = vld [vmem:[%s3 + $0x168] sm:$0xff]
      %v2028 = vld [vmem:[%s3 + $0x170] sm:$0xff]
      %v2029 = vld [vmem:[%s3 + $0x178] sm:$0xff]
      %v2030 = vld [vmem:[%s3 + $0x180] sm:$0xff]
      %v2031 = vld [vmem:[%s3 + $0x188] sm:$0xff]
      %v2032 = vld [vmem:[%s3 + $0x190] sm:$0xff]
      %v2033 = vld [vmem:[%s3 + $0x198] sm:$0xff]
      %v2034 = vld [vmem:[%s3 + $0x1a0] sm:$0xff]
      %v2035 = vld [vmem:[%s3 + $0x1a8] sm:$0xff]
      %v2036 = vld [vmem:[%s3 + $0x1b0] sm:$0xff]
      %v2037 = vld [vmem:[%s3 + $0x1b8] sm:$0xff]
      %v2038 = vld [vmem:[%s3 + $0x1c0] sm:$0xff]
      %v2039 = vld [vmem:[%s3 + $0x1c8] sm:$0xff]
      %v2040 = vld [vmem:[%s3 + $0x1d0] sm:$0xff]
      %v2041 = vld [vmem:[%s3 + $0x1d8] sm:$0xff]
      %v2042 = vld [vmem:[%s3 + $0x1e0] sm:$0xff]
      %v2043 = vld [vmem:[%s3 + $0x1e8] sm:$0xff]
      %v2044 = vld [vmem:[%s3 + $0x1f0] sm:$0xff]
      %v2045 = vld [vmem:[%s3 + $0x1f8] sm:$0xff]
      %2047 = vset.pattern.permute.xlu0 0
      %2048 = vperm.xlu0 %2047, %v1982
      %v2049 = vpop.permute.xlu0 %2048
      %2052 = vset.pattern.permute.xlu0 0
      %2053 = vperm.xlu0 %2052, %v1983
      %v2054 = vpop.permute.xlu0 %2053
      %2057 = vset.pattern.permute.xlu0 0
      %2058 = vperm.xlu0 %2057, %v1984
      %v2059 = vpop.permute.xlu0 %2058
      %2062 = vset.pattern.permute.xlu0 0
      %2063 = vperm.xlu0 %2062, %v1985
      %v2064 = vpop.permute.xlu0 %2063
      %2067 = vset.pattern.permute.xlu0 0
      %2068 = vperm.xlu0 %2067, %v1986
      %v2069 = vpop.permute.xlu0 %2068
      %2072 = vset.pattern.permute.xlu0 0
      %2073 = vperm.xlu0 %2072, %v1987
      %v2074 = vpop.permute.xlu0 %2073
      %2077 = vset.pattern.permute.xlu0 0
      %2078 = vperm.xlu0 %2077, %v1988
      %v2079 = vpop.permute.xlu0 %2078
      %2082 = vset.pattern.permute.xlu0 0
      %2083 = vperm.xlu0 %2082, %v1989
      %v2084 = vpop.permute.xlu0 %2083
      %2087 = vset.pattern.permute.xlu0 0
      %2088 = vperm.xlu0 %2087, %v1990
      %v2089 = vpop.permute.xlu0 %2088
      %2092 = vset.pattern.permute.xlu0 0
      %2093 = vperm.xlu0 %2092, %v1991
      %v2094 = vpop.permute.xlu0 %2093
      %2097 = vset.pattern.permute.xlu0 0
      %2098 = vperm.xlu0 %2097, %v1992
      %v2099 = vpop.permute.xlu0 %2098
      %2102 = vset.pattern.permute.xlu0 0
      %2103 = vperm.xlu0 %2102, %v1993
      %v2104 = vpop.permute.xlu0 %2103
      %2107 = vset.pattern.permute.xlu0 0
      %2108 = vperm.xlu0 %2107, %v1994
      %v2109 = vpop.permute.xlu0 %2108
      %2112 = vset.pattern.permute.xlu0 0
      %2113 = vperm.xlu0 %2112, %v1995
      %v2114 = vpop.permute.xlu0 %2113
      %2117 = vset.pattern.permute.xlu0 0
      %2118 = vperm.xlu0 %2117, %v1996
      %v2119 = vpop.permute.xlu0 %2118
      %2122 = vset.pattern.permute.xlu0 0
      %2123 = vperm.xlu0 %2122, %v1997
      %v2124 = vpop.permute.xlu0 %2123
      %2127 = vset.pattern.permute.xlu0 0
      %2128 = vperm.xlu0 %2127, %v1998
      %v2129 = vpop.permute.xlu0 %2128
      %2132 = vset.pattern.permute.xlu0 0
      %2133 = vperm.xlu0 %2132, %v1999
      %v2134 = vpop.permute.xlu0 %2133
      %2137 = vset.pattern.permute.xlu0 0
      %2138 = vperm.xlu0 %2137, %v2000
      %v2139 = vpop.permute.xlu0 %2138
      %2142 = vset.pattern.permute.xlu0 0
      %2143 = vperm.xlu0 %2142, %v2001
      %v2144 = vpop.permute.xlu0 %2143
      %2147 = vset.pattern.permute.xlu0 0
      %2148 = vperm.xlu0 %2147, %v2002
      %v2149 = vpop.permute.xlu0 %2148
      %2152 = vset.pattern.permute.xlu0 0
      %2153 = vperm.xlu0 %2152, %v2003
      %v2154 = vpop.permute.xlu0 %2153
      %2157 = vset.pattern.permute.xlu0 0
      %2158 = vperm.xlu0 %2157, %v2004
      %v2159 = vpop.permute.xlu0 %2158
      %2162 = vset.pattern.permute.xlu0 0
      %2163 = vperm.xlu0 %2162, %v2005
      %v2164 = vpop.permute.xlu0 %2163
      %2167 = vset.pattern.permute.xlu0 0
      %2168 = vperm.xlu0 %2167, %v2006
      %v2169 = vpop.permute.xlu0 %2168
      %2172 = vset.pattern.permute.xlu0 0
      %2173 = vperm.xlu0 %2172, %v2007
      %v2174 = vpop.permute.xlu0 %2173
      %2177 = vset.pattern.permute.xlu0 0
      %2178 = vperm.xlu0 %2177, %v2008
      %v2179 = vpop.permute.xlu0 %2178
      %2182 = vset.pattern.permute.xlu0 0
      %2183 = vperm.xlu0 %2182, %v2009
      %v2184 = vpop.permute.xlu0 %2183
      %2187 = vset.pattern.permute.xlu0 0
      %2188 = vperm.xlu0 %2187, %v2010
      %v2189 = vpop.permute.xlu0 %2188
      %2192 = vset.pattern.permute.xlu0 0
      %2193 = vperm.xlu0 %2192, %v2011
      %v2194 = vpop.permute.xlu0 %2193
      %2197 = vset.pattern.permute.xlu0 0
      %2198 = vperm.xlu0 %2197, %v2012
      %v2199 = vpop.permute.xlu0 %2198
      %2202 = vset.pattern.permute.xlu0 0
      %2203 = vperm.xlu0 %2202, %v2013
      %v2204 = vpop.permute.xlu0 %2203
      %2207 = vset.pattern.permute.xlu0 0
      %2208 = vperm.xlu0 %2207, %v2014
      %v2209 = vpop.permute.xlu0 %2208
      %2212 = vset.pattern.permute.xlu0 0
      %2213 = vperm.xlu0 %2212, %v2015
      %v2214 = vpop.permute.xlu0 %2213
      %2217 = vset.pattern.permute.xlu0 0
      %2218 = vperm.xlu0 %2217, %v2016
      %v2219 = vpop.permute.xlu0 %2218
      %2222 = vset.pattern.permute.xlu0 0
      %2223 = vperm.xlu0 %2222, %v2017
      %v2224 = vpop.permute.xlu0 %2223
      %2227 = vset.pattern.permute.xlu0 0
      %2228 = vperm.xlu0 %2227, %v2018
      %v2229 = vpop.permute.xlu0 %2228
      %2232 = vset.pattern.permute.xlu0 0
      %2233 = vperm.xlu0 %2232, %v2019
      %v2234 = vpop.permute.xlu0 %2233
      %2237 = vset.pattern.permute.xlu0 0
      %2238 = vperm.xlu0 %2237, %v2020
      %v2239 = vpop.permute.xlu0 %2238
      %2242 = vset.pattern.permute.xlu0 0
      %2243 = vperm.xlu0 %2242, %v2021
      %v2244 = vpop.permute.xlu0 %2243
      %2247 = vset.pattern.permute.xlu0 0
      %2248 = vperm.xlu0 %2247, %v2022
      %v2249 = vpop.permute.xlu0 %2248
      %2252 = vset.pattern.permute.xlu0 0
      %2253 = vperm.xlu0 %2252, %v2023
      %v2254 = vpop.permute.xlu0 %2253
      %2257 = vset.pattern.permute.xlu0 0
      %2258 = vperm.xlu0 %2257, %v2024
      %v2259 = vpop.permute.xlu0 %2258
      %2262 = vset.pattern.permute.xlu0 0
      %2263 = vperm.xlu0 %2262, %v2025
      %v2264 = vpop.permute.xlu0 %2263
      %2267 = vset.pattern.permute.xlu0 0
      %2268 = vperm.xlu0 %2267, %v2026
      %v2269 = vpop.permute.xlu0 %2268
      %2272 = vset.pattern.permute.xlu0 0
      %2273 = vperm.xlu0 %2272, %v2027
      %v2274 = vpop.permute.xlu0 %2273
      %2277 = vset.pattern.permute.xlu0 0
      %2278 = vperm.xlu0 %2277, %v2028
      %v2279 = vpop.permute.xlu0 %2278
      %2282 = vset.pattern.permute.xlu0 0
      %2283 = vperm.xlu0 %2282, %v2029
      %v2284 = vpop.permute.xlu0 %2283
      %2287 = vset.pattern.permute.xlu0 0
      %2288 = vperm.xlu0 %2287, %v2030
      %v2289 = vpop.permute.xlu0 %2288
      %2292 = vset.pattern.permute.xlu0 0
      %2293 = vperm.xlu0 %2292, %v2031
      %v2294 = vpop.permute.xlu0 %2293
      %2297 = vset.pattern.permute.xlu0 0
      %2298 = vperm.xlu0 %2297, %v2032
      %v2299 = vpop.permute.xlu0 %2298
      %2302 = vset.pattern.permute.xlu0 0
      %2303 = vperm.xlu0 %2302, %v2033
      %v2304 = vpop.permute.xlu0 %2303
      %2307 = vset.pattern.permute.xlu0 0
      %2308 = vperm.xlu0 %2307, %v2034
      %v2309 = vpop.permute.xlu0 %2308
      %2312 = vset.pattern.permute.xlu0 0
      %2313 = vperm.xlu0 %2312, %v2035
      %v2314 = vpop.permute.xlu0 %2313
      %2317 = vset.pattern.permute.xlu0 0
      %2318 = vperm.xlu0 %2317, %v2036
      %v2319 = vpop.permute.xlu0 %2318
      %2322 = vset.pattern.permute.xlu0 0
      %2323 = vperm.xlu0 %2322, %v2037
      %v2324 = vpop.permute.xlu0 %2323
      %2327 = vset.pattern.permute.xlu0 0
      %2328 = vperm.xlu0 %2327, %v2038
      %v2329 = vpop.permute.xlu0 %2328
      %2332 = vset.pattern.permute.xlu0 0
      %2333 = vperm.xlu0 %2332, %v2039
      %v2334 = vpop.permute.xlu0 %2333
      %2337 = vset.pattern.permute.xlu0 0
      %2338 = vperm.xlu0 %2337, %v2040
      %v2339 = vpop.permute.xlu0 %2338
      %2342 = vset.pattern.permute.xlu0 0
      %2343 = vperm.xlu0 %2342, %v2041
      %v2344 = vpop.permute.xlu0 %2343
      %2347 = vset.pattern.permute.xlu0 0
      %2348 = vperm.xlu0 %2347, %v2042
      %v2349 = vpop.permute.xlu0 %2348
      %2352 = vset.pattern.permute.xlu0 0
      %2353 = vperm.xlu0 %2352, %v2043
      %v2354 = vpop.permute.xlu0 %2353
      %2357 = vset.pattern.permute.xlu0 0
      %2358 = vperm.xlu0 %2357, %v2044
      %v2359 = vpop.permute.xlu0 %2358
      %2362 = vset.pattern.permute.xlu0 0
      %2363 = vperm.xlu0 %2362, %v2045
      %v2364 = vpop.permute.xlu0 %2363
      %v2366 = vmul.f32 %v1918, %v2049
      %v2367 = vmul.f32 %v1919, %v2054
      %v2368 = vmul.f32 %v1920, %v2059
      %v2369 = vmul.f32 %v1921, %v2064
      %v2370 = vmul.f32 %v1922, %v2069
      %v2371 = vmul.f32 %v1923, %v2074
      %v2372 = vmul.f32 %v1924, %v2079
      %v2373 = vmul.f32 %v1925, %v2084
      %v2374 = vmul.f32 %v1926, %v2089
      %v2375 = vmul.f32 %v1927, %v2094
      %v2376 = vmul.f32 %v1928, %v2099
      %v2377 = vmul.f32 %v1929, %v2104
      %v2378 = vmul.f32 %v1930, %v2109
      %v2379 = vmul.f32 %v1931, %v2114
      %v2380 = vmul.f32 %v1932, %v2119
      %v2381 = vmul.f32 %v1933, %v2124
      %v2382 = vmul.f32 %v1934, %v2129
      %v2383 = vmul.f32 %v1935, %v2134
      %v2384 = vmul.f32 %v1936, %v2139
      %v2385 = vmul.f32 %v1937, %v2144
      %v2386 = vmul.f32 %v1938, %v2149
      %v2387 = vmul.f32 %v1939, %v2154
      %v2388 = vmul.f32 %v1940, %v2159
      %v2389 = vmul.f32 %v1941, %v2164
      %v2390 = vmul.f32 %v1942, %v2169
      %v2391 = vmul.f32 %v1943, %v2174
      %v2392 = vmul.f32 %v1944, %v2179
      %v2393 = vmul.f32 %v1945, %v2184
      %v2394 = vmul.f32 %v1946, %v2189
      %v2395 = vmul.f32 %v1947, %v2194
      %v2396 = vmul.f32 %v1948, %v2199
      %v2397 = vmul.f32 %v1949, %v2204
      %v2398 = vmul.f32 %v1950, %v2209
      %v2399 = vmul.f32 %v1951, %v2214
      %v2400 = vmul.f32 %v1952, %v2219
      %v2401 = vmul.f32 %v1953, %v2224
      %v2402 = vmul.f32 %v1954, %v2229
      %v2403 = vmul.f32 %v1955, %v2234
      %v2404 = vmul.f32 %v1956, %v2239
      %v2405 = vmul.f32 %v1957, %v2244
      %v2406 = vmul.f32 %v1958, %v2249
      %v2407 = vmul.f32 %v1959, %v2254
      %v2408 = vmul.f32 %v1960, %v2259
      %v2409 = vmul.f32 %v1961, %v2264
      %v2410 = vmul.f32 %v1962, %v2269
      %v2411 = vmul.f32 %v1963, %v2274
      %v2412 = vmul.f32 %v1964, %v2279
      %v2413 = vmul.f32 %v1965, %v2284
      %v2414 = vmul.f32 %v1966, %v2289
      %v2415 = vmul.f32 %v1967, %v2294
      %v2416 = vmul.f32 %v1968, %v2299
      %v2417 = vmul.f32 %v1969, %v2304
      %v2418 = vmul.f32 %v1970, %v2309
      %v2419 = vmul.f32 %v1971, %v2314
      %v2420 = vmul.f32 %v1972, %v2319
      %v2421 = vmul.f32 %v1973, %v2324
      %v2422 = vmul.f32 %v1974, %v2329
      %v2423 = vmul.f32 %v1975, %v2334
      %v2424 = vmul.f32 %v1976, %v2339
      %v2425 = vmul.f32 %v1977, %v2344
      %v2426 = vmul.f32 %v1978, %v2349
      %v2427 = vmul.f32 %v1979, %v2354
      %v2428 = vmul.f32 %v1980, %v2359
      %v2429 = vmul.f32 %v1981, %v2364
      %v2430 = vld [vmem:[%s2] sm:$0xf]
      %v2431 = vld [vmem:[%s2 + $0x4] sm:$0xf]
      %v2432 = vld [vmem:[%s2 + $0x8] sm:$0xf]
      %v2433 = vld [vmem:[%s2 + $0xc] sm:$0xf]
      %v2434 = vld [vmem:[%s2 + $0x10] sm:$0xf]
      %v2435 = vld [vmem:[%s2 + $0x14] sm:$0xf]
      %v2436 = vld [vmem:[%s2 + $0x18] sm:$0xf]
      %v2437 = vld [vmem:[%s2 + $0x1c] sm:$0xf]
      %v2438 = vld [vmem:[%s2 + $0x20] sm:$0xf]
      %v2439 = vld [vmem:[%s2 + $0x24] sm:$0xf]
      %v2440 = vld [vmem:[%s2 + $0x28] sm:$0xf]
      %v2441 = vld [vmem:[%s2 + $0x2c] sm:$0xf]
      %v2442 = vld [vmem:[%s2 + $0x30] sm:$0xf]
      %v2443 = vld [vmem:[%s2 + $0x34] sm:$0xf]
      %v2444 = vld [vmem:[%s2 + $0x38] sm:$0xf]
      %v2445 = vld [vmem:[%s2 + $0x3c] sm:$0xf]
      %v2446 = vld [vmem:[%s2 + $0x40] sm:$0xf]
      %v2447 = vld [vmem:[%s2 + $0x44] sm:$0xf]
      %v2448 = vld [vmem:[%s2 + $0x48] sm:$0xf]
      %v2449 = vld [vmem:[%s2 + $0x4c] sm:$0xf]
      %v2450 = vld [vmem:[%s2 + $0x50] sm:$0xf]
      %v2451 = vld [vmem:[%s2 + $0x54] sm:$0xf]
      %v2452 = vld [vmem:[%s2 + $0x58] sm:$0xf]
      %v2453 = vld [vmem:[%s2 + $0x5c] sm:$0xf]
      %v2454 = vld [vmem:[%s2 + $0x60] sm:$0xf]
      %v2455 = vld [vmem:[%s2 + $0x64] sm:$0xf]
      %v2456 = vld [vmem:[%s2 + $0x68] sm:$0xf]
      %v2457 = vld [vmem:[%s2 + $0x6c] sm:$0xf]
      %v2458 = vld [vmem:[%s2 + $0x70] sm:$0xf]
      %v2459 = vld [vmem:[%s2 + $0x74] sm:$0xf]
      %v2460 = vld [vmem:[%s2 + $0x78] sm:$0xf]
      %v2461 = vld [vmem:[%s2 + $0x7c] sm:$0xf]
      %v2462 = vld [vmem:[%s2 + $0x80] sm:$0xf]
      %v2463 = vld [vmem:[%s2 + $0x84] sm:$0xf]
      %v2464 = vld [vmem:[%s2 + $0x88] sm:$0xf]
      %v2465 = vld [vmem:[%s2 + $0x8c] sm:$0xf]
      %v2466 = vld [vmem:[%s2 + $0x90] sm:$0xf]
      %v2467 = vld [vmem:[%s2 + $0x94] sm:$0xf]
      %v2468 = vld [vmem:[%s2 + $0x98] sm:$0xf]
      %v2469 = vld [vmem:[%s2 + $0x9c] sm:$0xf]
      %v2470 = vld [vmem:[%s2 + $0xa0] sm:$0xf]
      %v2471 = vld [vmem:[%s2 + $0xa4] sm:$0xf]
      %v2472 = vld [vmem:[%s2 + $0xa8] sm:$0xf]
      %v2473 = vld [vmem:[%s2 + $0xac] sm:$0xf]
      %v2474 = vld [vmem:[%s2 + $0xb0] sm:$0xf]
      %v2475 = vld [vmem:[%s2 + $0xb4] sm:$0xf]
      %v2476 = vld [vmem:[%s2 + $0xb8] sm:$0xf]
      %v2477 = vld [vmem:[%s2 + $0xbc] sm:$0xf]
      %v2478 = vld [vmem:[%s2 + $0xc0] sm:$0xf]
      %v2479 = vld [vmem:[%s2 + $0xc4] sm:$0xf]
      %v2480 = vld [vmem:[%s2 + $0xc8] sm:$0xf]
      %v2481 = vld [vmem:[%s2 + $0xcc] sm:$0xf]
      %v2482 = vld [vmem:[%s2 + $0xd0] sm:$0xf]
      %v2483 = vld [vmem:[%s2 + $0xd4] sm:$0xf]
      %v2484 = vld [vmem:[%s2 + $0xd8] sm:$0xf]
      %v2485 = vld [vmem:[%s2 + $0xdc] sm:$0xf]
      %v2486 = vld [vmem:[%s2 + $0xe0] sm:$0xf]
      %v2487 = vld [vmem:[%s2 + $0xe4] sm:$0xf]
      %v2488 = vld [vmem:[%s2 + $0xe8] sm:$0xf]
      %v2489 = vld [vmem:[%s2 + $0xec] sm:$0xf]
      %v2490 = vld [vmem:[%s2 + $0xf0] sm:$0xf]
      %v2491 = vld [vmem:[%s2 + $0xf4] sm:$0xf]
      %v2492 = vld [vmem:[%s2 + $0xf8] sm:$0xf]
      %v2493 = vld [vmem:[%s2 + $0xfc] sm:$0xf]
      %v2494 = vld [vmem:[#allocation6] sm:$0xf]
      %v2495 = vld [vmem:[#allocation6 + $0x4] sm:$0xf]
      %v2496 = vld [vmem:[#allocation6 + $0x8] sm:$0xf]
      %v2497 = vld [vmem:[#allocation6 + $0xc] sm:$0xf]
      %v2498 = vld [vmem:[#allocation6 + $0x10] sm:$0xf]
      %v2499 = vld [vmem:[#allocation6 + $0x14] sm:$0xf]
      %v2500 = vld [vmem:[#allocation6 + $0x18] sm:$0xf]
      %v2501 = vld [vmem:[#allocation6 + $0x1c] sm:$0xf]
      %v2502 = vld [vmem:[#allocation6 + $0x20] sm:$0xf]
      %v2503 = vld [vmem:[#allocation6 + $0x24] sm:$0xf]
      %v2504 = vld [vmem:[#allocation6 + $0x28] sm:$0xf]
      %v2505 = vld [vmem:[#allocation6 + $0x2c] sm:$0xf]
      %v2506 = vld [vmem:[#allocation6 + $0x30] sm:$0xf]
      %v2507 = vld [vmem:[#allocation6 + $0x34] sm:$0xf]
      %v2508 = vld [vmem:[#allocation6 + $0x38] sm:$0xf]
      %v2509 = vld [vmem:[#allocation6 + $0x3c] sm:$0xf]
      %v2510 = vld [vmem:[%s5] sm:$0x1]
      %v2512 = vlaneseq
      %v2513 = vshrl.u32 %v2512, 7
      %v2514 = vsub.s32 0, %v2513
      %v2515 = vrot.slane %v2510, %v2514
      %v2581 = vunpack.c.l.b16 %v2430
      %v2582 = vunpack.c.l.b16 %v2431
      %v2583 = vunpack.c.l.b16 %v2432
      %v2584 = vunpack.c.l.b16 %v2433
      %v2585 = vunpack.c.l.b16 %v2434
      %v2586 = vunpack.c.l.b16 %v2435
      %v2587 = vunpack.c.l.b16 %v2436
      %v2588 = vunpack.c.l.b16 %v2437
      %v2589 = vunpack.c.l.b16 %v2438
      %v2590 = vunpack.c.l.b16 %v2439
      %v2591 = vunpack.c.l.b16 %v2440
      %v2592 = vunpack.c.l.b16 %v2441
      %v2593 = vunpack.c.l.b16 %v2442
      %v2594 = vunpack.c.l.b16 %v2443
      %v2595 = vunpack.c.l.b16 %v2444
      %v2596 = vunpack.c.l.b16 %v2445
      %v2597 = vunpack.c.l.b16 %v2446
      %v2598 = vunpack.c.l.b16 %v2447
      %v2599 = vunpack.c.l.b16 %v2448
      %v2600 = vunpack.c.l.b16 %v2449
      %v2601 = vunpack.c.l.b16 %v2450
      %v2602 = vunpack.c.l.b16 %v2451
      %v2603 = vunpack.c.l.b16 %v2452
      %v2604 = vunpack.c.l.b16 %v2453
      %v2605 = vunpack.c.l.b16 %v2454
      %v2606 = vunpack.c.l.b16 %v2455
      %v2607 = vunpack.c.l.b16 %v2456
      %v2608 = vunpack.c.l.b16 %v2457
      %v2609 = vunpack.c.l.b16 %v2458
      %v2610 = vunpack.c.l.b16 %v2459
      %v2611 = vunpack.c.l.b16 %v2460
      %v2612 = vunpack.c.l.b16 %v2461
      %v2613 = vunpack.c.l.b16 %v2462
      %v2614 = vunpack.c.l.b16 %v2463
      %v2615 = vunpack.c.l.b16 %v2464
      %v2616 = vunpack.c.l.b16 %v2465
      %v2617 = vunpack.c.l.b16 %v2466
      %v2618 = vunpack.c.l.b16 %v2467
      %v2619 = vunpack.c.l.b16 %v2468
      %v2620 = vunpack.c.l.b16 %v2469
      %v2621 = vunpack.c.l.b16 %v2470
      %v2622 = vunpack.c.l.b16 %v2471
      %v2623 = vunpack.c.l.b16 %v2472
      %v2624 = vunpack.c.l.b16 %v2473
      %v2625 = vunpack.c.l.b16 %v2474
      %v2626 = vunpack.c.l.b16 %v2475
      %v2627 = vunpack.c.l.b16 %v2476
      %v2628 = vunpack.c.l.b16 %v2477
      %v2629 = vunpack.c.l.b16 %v2478
      %v2630 = vunpack.c.l.b16 %v2479
      %v2631 = vunpack.c.l.b16 %v2480
      %v2632 = vunpack.c.l.b16 %v2481
      %v2633 = vunpack.c.l.b16 %v2482
      %v2634 = vunpack.c.l.b16 %v2483
      %v2635 = vunpack.c.l.b16 %v2484
      %v2636 = vunpack.c.l.b16 %v2485
      %v2637 = vunpack.c.l.b16 %v2486
      %v2638 = vunpack.c.l.b16 %v2487
      %v2639 = vunpack.c.l.b16 %v2488
      %v2640 = vunpack.c.l.b16 %v2489
      %v2641 = vunpack.c.l.b16 %v2490
      %v2642 = vunpack.c.l.b16 %v2491
      %v2643 = vunpack.c.l.b16 %v2492
      %v2644 = vunpack.c.l.b16 %v2493
      %v2645 = vpack.c.b16 %v2582, %v2581
      %v2646 = vpack.c.b16 %v2584, %v2583
      %v2647 = vpack.c.b16 %v2586, %v2585
      %v2648 = vpack.c.b16 %v2588, %v2587
      %v2649 = vpack.c.b16 %v2590, %v2589
      %v2650 = vpack.c.b16 %v2592, %v2591
      %v2651 = vpack.c.b16 %v2594, %v2593
      %v2652 = vpack.c.b16 %v2596, %v2595
      %v2653 = vpack.c.b16 %v2598, %v2597
      %v2654 = vpack.c.b16 %v2600, %v2599
      %v2655 = vpack.c.b16 %v2602, %v2601
      %v2656 = vpack.c.b16 %v2604, %v2603
      %v2657 = vpack.c.b16 %v2606, %v2605
      %v2658 = vpack.c.b16 %v2608, %v2607
      %v2659 = vpack.c.b16 %v2610, %v2609
      %v2660 = vpack.c.b16 %v2612, %v2611
      %v2661 = vpack.c.b16 %v2614, %v2613
      %v2662 = vpack.c.b16 %v2616, %v2615
      %v2663 = vpack.c.b16 %v2618, %v2617
      %v2664 = vpack.c.b16 %v2620, %v2619
      %v2665 = vpack.c.b16 %v2622, %v2621
      %v2666 = vpack.c.b16 %v2624, %v2623
      %v2667 = vpack.c.b16 %v2626, %v2625
      %v2668 = vpack.c.b16 %v2628, %v2627
      %v2669 = vpack.c.b16 %v2630, %v2629
      %v2670 = vpack.c.b16 %v2632, %v2631
      %v2671 = vpack.c.b16 %v2634, %v2633
      %v2672 = vpack.c.b16 %v2636, %v2635
      %v2673 = vpack.c.b16 %v2638, %v2637
      %v2674 = vpack.c.b16 %v2640, %v2639
      %v2675 = vpack.c.b16 %v2642, %v2641
      %v2676 = vpack.c.b16 %v2644, %v2643
      %v2725 = vunpack.c.l.b16 %v2494
      %v2726 = vunpack.c.l.b16 %v2495
      %v2727 = vunpack.c.l.b16 %v2496
      %v2728 = vunpack.c.l.b16 %v2497
      %v2729 = vunpack.c.l.b16 %v2498
      %v2730 = vunpack.c.l.b16 %v2499
      %v2731 = vunpack.c.l.b16 %v2500
      %v2732 = vunpack.c.l.b16 %v2501
      %v2733 = vunpack.c.l.b16 %v2502
      %v2734 = vunpack.c.l.b16 %v2503
      %v2735 = vunpack.c.l.b16 %v2504
      %v2736 = vunpack.c.l.b16 %v2505
      %v2737 = vunpack.c.l.b16 %v2506
      %v2738 = vunpack.c.l.b16 %v2507
      %v2739 = vunpack.c.l.b16 %v2508
      %v2740 = vunpack.c.l.b16 %v2509
      %v2741 = vpack.c.b16 %v2726, %v2725
      %v2742 = vpack.c.b16 %v2728, %v2727
      %v2743 = vpack.c.b16 %v2730, %v2729
      %v2744 = vpack.c.b16 %v2732, %v2731
      %v2745 = vpack.c.b16 %v2734, %v2733
      %v2746 = vpack.c.b16 %v2736, %v2735
      %v2747 = vpack.c.b16 %v2738, %v2737
      %v2748 = vpack.c.b16 %v2740, %v2739
      %2757 = vmatprep.subr.bf16.mxu0 0
      %2758 = vmatpush1.bf16.msra.mxu0 %v2748
      %2759 = vmatprep.subr.bf16.mxu0 0
      %2760 = vmatpush1.bf16.msra.mxu0 %v2747
      %2761 = vmatprep.subr.bf16.mxu0 0
      %2762 = vmatpush1.bf16.msra.mxu0 %v2746
      %2763 = vmatprep.subr.bf16.mxu0 0
      %2764 = vmatpush1.bf16.msra.mxu0 %v2745
      %2765 = vmatprep.subr.bf16.mxu0 0
      %2766 = vmatpush1.bf16.msra.mxu0 %v2744
      %2767 = vmatprep.subr.bf16.mxu0 0
      %2768 = vmatpush1.bf16.msra.mxu0 %v2743
      %2769 = vmatprep.subr.bf16.mxu0 0
      %2770 = vmatpush1.bf16.msra.mxu0 %v2742
      %2771 = vmatprep.subr.bf16.mxu0 0
      %2772 = vmatpush1.bf16.msra.mxu0 %v2741
      %2773 = vmatprep.subr.bf16.mxu0 0
      %2774 = vmatpush2.bf16.msra.mxu0 0
      %2775 = vmatprep.subr.bf16.mxu0 0
      %2776 = vmatpush2.bf16.msra.mxu0 0
      %2777 = vmatprep.subr.bf16.mxu0 0
      %2778 = vmatpush2.bf16.msra.mxu0 0
      %2779 = vmatprep.subr.bf16.mxu0 0
      %2780 = vmatpush2.bf16.msra.mxu0 0
      %2781 = vmatprep.subr.bf16.mxu0 0
      %2782 = vmatpush2.bf16.msra.mxu0 0
      %2783 = vmatprep.subr.bf16.mxu0 0
      %2784 = vmatpush2.bf16.msra.mxu0 0
      %2785 = vmatprep.subr.bf16.mxu0 0
      %2786 = vmatpush2.bf16.msra.mxu0 0
      %2787 = vmatprep.subr.bf16.mxu0 0
      %2788 = vmatpush2.bf16.msra.mxu0 0
      %2789 = vmatprep.mubr.bf16.mxu0 0
      %2790 = vmatmul.mubr.bf16.gmra.mxu0 %v2645
      %v2791 = vpop.f32.mrf.mxu0
      %v2792 = vadd.f32 %v2515, %v2791
      %v2793 = vpop.f32.mrf.mxu0
      %v2794 = vpop.f32.mrf.mxu0
      %v2795 = vadd.f32 %v2515, %v2794
      %v2796 = vpop.f32.mrf.mxu0
      %2797 = vmatprep.mubr.bf16.mxu0 0
      %2798 = vmatmul.mubr.bf16.gmra.mxu0 %v2646
      %v2799 = vpop.f32.mrf.mxu0
      %v2800 = vadd.f32 %v2515, %v2799
      %v2801 = vpop.f32.mrf.mxu0
      %v2802 = vpop.f32.mrf.mxu0
      %v2803 = vadd.f32 %v2515, %v2802
      %v2804 = vpop.f32.mrf.mxu0
      %2805 = vmatprep.mubr.bf16.mxu0 0
      %2806 = vmatmul.mubr.bf16.gmra.mxu0 %v2647
      %v2807 = vpop.f32.mrf.mxu0
      %v2808 = vadd.f32 %v2515, %v2807
      %v2809 = vpop.f32.mrf.mxu0
      %v2810 = vpop.f32.mrf.mxu0
      %v2811 = vadd.f32 %v2515, %v2810
      %v2812 = vpop.f32.mrf.mxu0
      %2813 = vmatprep.mubr.bf16.mxu0 0
      %2814 = vmatmul.mubr.bf16.gmra.mxu0 %v2648
      %v2815 = vpop.f32.mrf.mxu0
      %v2816 = vadd.f32 %v2515, %v2815
      %v2817 = vpop.f32.mrf.mxu0
      %v2818 = vpop.f32.mrf.mxu0
      %v2819 = vadd.f32 %v2515, %v2818
      %v2820 = vpop.f32.mrf.mxu0
      %2821 = vmatprep.mubr.bf16.mxu0 0
      %2822 = vmatmul.mubr.bf16.gmra.mxu0 %v2649
      %v2823 = vpop.f32.mrf.mxu0
      %v2824 = vadd.f32 %v2515, %v2823
      %v2825 = vpop.f32.mrf.mxu0
      %v2826 = vpop.f32.mrf.mxu0
      %v2827 = vadd.f32 %v2515, %v2826
      %v2828 = vpop.f32.mrf.mxu0
      %2829 = vmatprep.mubr.bf16.mxu0 0
      %2830 = vmatmul.mubr.bf16.gmra.mxu0 %v2650
      %v2831 = vpop.f32.mrf.mxu0
      %v2832 = vadd.f32 %v2515, %v2831
      %v2833 = vpop.f32.mrf.mxu0
      %v2834 = vpop.f32.mrf.mxu0
      %v2835 = vadd.f32 %v2515, %v2834
      %v2836 = vpop.f32.mrf.mxu0
      %2837 = vmatprep.mubr.bf16.mxu0 0
      %2838 = vmatmul.mubr.bf16.gmra.mxu0 %v2651
      %v2839 = vpop.f32.mrf.mxu0
      %v2840 = vadd.f32 %v2515, %v2839
      %v2841 = vpop.f32.mrf.mxu0
      %v2842 = vpop.f32.mrf.mxu0
      %v2843 = vadd.f32 %v2515, %v2842
      %v2844 = vpop.f32.mrf.mxu0
      %2845 = vmatprep.mubr.bf16.mxu0 0
      %2846 = vmatmul.mubr.bf16.gmra.mxu0 %v2652
      %v2847 = vpop.f32.mrf.mxu0
      %v2848 = vadd.f32 %v2515, %v2847
      %v2849 = vpop.f32.mrf.mxu0
      %v2850 = vpop.f32.mrf.mxu0
      %v2851 = vadd.f32 %v2515, %v2850
      %v2852 = vpop.f32.mrf.mxu0
      %2853 = vmatprep.mubr.bf16.mxu0 0
      %2854 = vmatmul.mubr.bf16.gmra.mxu0 %v2653
      %v2855 = vpop.f32.mrf.mxu0
      %v2856 = vadd.f32 %v2515, %v2855
      %v2857 = vpop.f32.mrf.mxu0
      %v2858 = vpop.f32.mrf.mxu0
      %v2859 = vadd.f32 %v2515, %v2858
      %v2860 = vpop.f32.mrf.mxu0
      %2861 = vmatprep.mubr.bf16.mxu0 0
      %2862 = vmatmul.mubr.bf16.gmra.mxu0 %v2654
      %v2863 = vpop.f32.mrf.mxu0
      %v2864 = vadd.f32 %v2515, %v2863
      %v2865 = vpop.f32.mrf.mxu0
      %v2866 = vpop.f32.mrf.mxu0
      %v2867 = vadd.f32 %v2515, %v2866
      %v2868 = vpop.f32.mrf.mxu0
      %2869 = vmatprep.mubr.bf16.mxu0 0
      %2870 = vmatmul.mubr.bf16.gmra.mxu0 %v2655
      %v2871 = vpop.f32.mrf.mxu0
      %v2872 = vadd.f32 %v2515, %v2871
      %v2873 = vpop.f32.mrf.mxu0
      %v2874 = vpop.f32.mrf.mxu0
      %v2875 = vadd.f32 %v2515, %v2874
      %v2876 = vpop.f32.mrf.mxu0
      %2877 = vmatprep.mubr.bf16.mxu0 0
      %2878 = vmatmul.mubr.bf16.gmra.mxu0 %v2656
      %v2879 = vpop.f32.mrf.mxu0
      %v2880 = vadd.f32 %v2515, %v2879
      %v2881 = vpop.f32.mrf.mxu0
      %v2882 = vpop.f32.mrf.mxu0
      %v2883 = vadd.f32 %v2515, %v2882
      %v2884 = vpop.f32.mrf.mxu0
      %2885 = vmatprep.mubr.bf16.mxu0 0
      %2886 = vmatmul.mubr.bf16.gmra.mxu0 %v2657
      %v2887 = vpop.f32.mrf.mxu0
      %v2888 = vadd.f32 %v2515, %v2887
      %v2889 = vpop.f32.mrf.mxu0
      %v2890 = vpop.f32.mrf.mxu0
      %v2891 = vadd.f32 %v2515, %v2890
      %v2892 = vpop.f32.mrf.mxu0
      %2893 = vmatprep.mubr.bf16.mxu0 0
      %2894 = vmatmul.mubr.bf16.gmra.mxu0 %v2658
      %v2895 = vpop.f32.mrf.mxu0
      %v2896 = vadd.f32 %v2515, %v2895
      %v2897 = vpop.f32.mrf.mxu0
      %v2898 = vpop.f32.mrf.mxu0
      %v2899 = vadd.f32 %v2515, %v2898
      %v2900 = vpop.f32.mrf.mxu0
      %2901 = vmatprep.mubr.bf16.mxu0 0
      %2902 = vmatmul.mubr.bf16.gmra.mxu0 %v2659
      %v2903 = vpop.f32.mrf.mxu0
      %v2904 = vadd.f32 %v2515, %v2903
      %v2905 = vpop.f32.mrf.mxu0
      %v2906 = vpop.f32.mrf.mxu0
      %v2907 = vadd.f32 %v2515, %v2906
      %v2908 = vpop.f32.mrf.mxu0
      %2909 = vmatprep.mubr.bf16.mxu0 0
      %2910 = vmatmul.mubr.bf16.gmra.mxu0 %v2660
      %v2911 = vpop.f32.mrf.mxu0
      %v2912 = vadd.f32 %v2515, %v2911
      %v2913 = vpop.f32.mrf.mxu0
      %v2914 = vpop.f32.mrf.mxu0
      %v2915 = vadd.f32 %v2515, %v2914
      %v2916 = vpop.f32.mrf.mxu0
      %2917 = vmatprep.mubr.bf16.mxu0 0
      %2918 = vmatmul.mubr.bf16.gmra.mxu0 %v2661
      %v2919 = vpop.f32.mrf.mxu0
      %v2920 = vadd.f32 %v2515, %v2919
      %v2921 = vpop.f32.mrf.mxu0
      %v2922 = vpop.f32.mrf.mxu0
      %v2923 = vadd.f32 %v2515, %v2922
      %v2924 = vpop.f32.mrf.mxu0
      %2925 = vmatprep.mubr.bf16.mxu0 0
      %2926 = vmatmul.mubr.bf16.gmra.mxu0 %v2662
      %v2927 = vpop.f32.mrf.mxu0
      %v2928 = vadd.f32 %v2515, %v2927
      %v2929 = vpop.f32.mrf.mxu0
      %v2930 = vpop.f32.mrf.mxu0
      %v2931 = vadd.f32 %v2515, %v2930
      %v2932 = vpop.f32.mrf.mxu0
      %2933 = vmatprep.mubr.bf16.mxu0 0
      %2934 = vmatmul.mubr.bf16.gmra.mxu0 %v2663
      %v2935 = vpop.f32.mrf.mxu0
      %v2936 = vadd.f32 %v2515, %v2935
      %v2937 = vpop.f32.mrf.mxu0
      %v2938 = vpop.f32.mrf.mxu0
      %v2939 = vadd.f32 %v2515, %v2938
      %v2940 = vpop.f32.mrf.mxu0
      %2941 = vmatprep.mubr.bf16.mxu0 0
      %2942 = vmatmul.mubr.bf16.gmra.mxu0 %v2664
      %v2943 = vpop.f32.mrf.mxu0
      %v2944 = vadd.f32 %v2515, %v2943
      %v2945 = vpop.f32.mrf.mxu0
      %v2946 = vpop.f32.mrf.mxu0
      %v2947 = vadd.f32 %v2515, %v2946
      %v2948 = vpop.f32.mrf.mxu0
      %2949 = vmatprep.mubr.bf16.mxu0 0
      %2950 = vmatmul.mubr.bf16.gmra.mxu0 %v2665
      %v2951 = vpop.f32.mrf.mxu0
      %v2952 = vadd.f32 %v2515, %v2951
      %v2953 = vpop.f32.mrf.mxu0
      %v2954 = vpop.f32.mrf.mxu0
      %v2955 = vadd.f32 %v2515, %v2954
      %v2956 = vpop.f32.mrf.mxu0
      %2957 = vmatprep.mubr.bf16.mxu0 0
      %2958 = vmatmul.mubr.bf16.gmra.mxu0 %v2666
      %v2959 = vpop.f32.mrf.mxu0
      %v2960 = vadd.f32 %v2515, %v2959
      %v2961 = vpop.f32.mrf.mxu0
      %v2962 = vpop.f32.mrf.mxu0
      %v2963 = vadd.f32 %v2515, %v2962
      %v2964 = vpop.f32.mrf.mxu0
      %2965 = vmatprep.mubr.bf16.mxu0 0
      %2966 = vmatmul.mubr.bf16.gmra.mxu0 %v2667
      %v2967 = vpop.f32.mrf.mxu0
      %v2968 = vadd.f32 %v2515, %v2967
      %v2969 = vpop.f32.mrf.mxu0
      %v2970 = vpop.f32.mrf.mxu0
      %v2971 = vadd.f32 %v2515, %v2970
      %v2972 = vpop.f32.mrf.mxu0
      %2973 = vmatprep.mubr.bf16.mxu0 0
      %2974 = vmatmul.mubr.bf16.gmra.mxu0 %v2668
      %v2975 = vpop.f32.mrf.mxu0
      %v2976 = vadd.f32 %v2515, %v2975
      %v2977 = vpop.f32.mrf.mxu0
      %v2978 = vpop.f32.mrf.mxu0
      %v2979 = vadd.f32 %v2515, %v2978
      %v2980 = vpop.f32.mrf.mxu0
      %2981 = vmatprep.mubr.bf16.mxu0 0
      %2982 = vmatmul.mubr.bf16.gmra.mxu0 %v2669
      %v2983 = vpop.f32.mrf.mxu0
      %v2984 = vadd.f32 %v2515, %v2983
      %v2985 = vpop.f32.mrf.mxu0
      %v2986 = vpop.f32.mrf.mxu0
      %v2987 = vadd.f32 %v2515, %v2986
      %v2988 = vpop.f32.mrf.mxu0
      %2989 = vmatprep.mubr.bf16.mxu0 0
      %2990 = vmatmul.mubr.bf16.gmra.mxu0 %v2670
      %v2991 = vpop.f32.mrf.mxu0
      %v2992 = vadd.f32 %v2515, %v2991
      %v2993 = vpop.f32.mrf.mxu0
      %v2994 = vpop.f32.mrf.mxu0
      %v2995 = vadd.f32 %v2515, %v2994
      %v2996 = vpop.f32.mrf.mxu0
      %2997 = vmatprep.mubr.bf16.mxu0 0
      %2998 = vmatmul.mubr.bf16.gmra.mxu0 %v2671
      %v2999 = vpop.f32.mrf.mxu0
      %v3000 = vadd.f32 %v2515, %v2999
      %v3001 = vpop.f32.mrf.mxu0
      %v3002 = vpop.f32.mrf.mxu0
      %v3003 = vadd.f32 %v2515, %v3002
      %v3004 = vpop.f32.mrf.mxu0
      %3005 = vmatprep.mubr.bf16.mxu0 0
      %3006 = vmatmul.mubr.bf16.gmra.mxu0 %v2672
      %v3007 = vpop.f32.mrf.mxu0
      %v3008 = vadd.f32 %v2515, %v3007
      %v3009 = vpop.f32.mrf.mxu0
      %v3010 = vpop.f32.mrf.mxu0
      %v3011 = vadd.f32 %v2515, %v3010
      %v3012 = vpop.f32.mrf.mxu0
      %3013 = vmatprep.mubr.bf16.mxu0 0
      %3014 = vmatmul.mubr.bf16.gmra.mxu0 %v2673
      %v3015 = vpop.f32.mrf.mxu0
      %v3016 = vadd.f32 %v2515, %v3015
      %v3017 = vpop.f32.mrf.mxu0
      %v3018 = vpop.f32.mrf.mxu0
      %v3019 = vadd.f32 %v2515, %v3018
      %v3020 = vpop.f32.mrf.mxu0
      %3021 = vmatprep.mubr.bf16.mxu0 0
      %3022 = vmatmul.mubr.bf16.gmra.mxu0 %v2674
      %v3023 = vpop.f32.mrf.mxu0
      %v3024 = vadd.f32 %v2515, %v3023
      %v3025 = vpop.f32.mrf.mxu0
      %v3026 = vpop.f32.mrf.mxu0
      %v3027 = vadd.f32 %v2515, %v3026
      %v3028 = vpop.f32.mrf.mxu0
      %3029 = vmatprep.mubr.bf16.mxu0 0
      %3030 = vmatmul.mubr.bf16.gmra.mxu0 %v2675
      %v3031 = vpop.f32.mrf.mxu0
      %v3032 = vadd.f32 %v2515, %v3031
      %v3033 = vpop.f32.mrf.mxu0
      %v3034 = vpop.f32.mrf.mxu0
      %v3035 = vadd.f32 %v2515, %v3034
      %v3036 = vpop.f32.mrf.mxu0
      %3037 = vmatprep.mubr.bf16.mxu0 0
      %3038 = vmatmul.mubr.bf16.gmra.mxu0 %v2676
      %v3039 = vpop.f32.mrf.mxu0
      %v3040 = vadd.f32 %v2515, %v3039
      %v3041 = vpop.f32.mrf.mxu0
      %v3042 = vpop.f32.mrf.mxu0
      %v3043 = vadd.f32 %v2515, %v3042
      %v3044 = vpop.f32.mrf.mxu0
      %3045 = vdwg.mxu0
      %v3046 = vadd.f32 %v2792, %v2366
      %v3047 = vadd.f32 %v2795, %v2367
      %v3048 = vadd.f32 %v2800, %v2368
      %v3049 = vadd.f32 %v2803, %v2369
      %v3050 = vadd.f32 %v2808, %v2370
      %v3051 = vadd.f32 %v2811, %v2371
      %v3052 = vadd.f32 %v2816, %v2372
      %v3053 = vadd.f32 %v2819, %v2373
      %v3054 = vadd.f32 %v2824, %v2374
      %v3055 = vadd.f32 %v2827, %v2375
      %v3056 = vadd.f32 %v2832, %v2376
      %v3057 = vadd.f32 %v2835, %v2377
      %v3058 = vadd.f32 %v2840, %v2378
      %v3059 = vadd.f32 %v2843, %v2379
      %v3060 = vadd.f32 %v2848, %v2380
      %v3061 = vadd.f32 %v2851, %v2381
      %v3062 = vadd.f32 %v2856, %v2382
      %v3063 = vadd.f32 %v2859, %v2383
      %v3064 = vadd.f32 %v2864, %v2384
      %v3065 = vadd.f32 %v2867, %v2385
      %v3066 = vadd.f32 %v2872, %v2386
      %v3067 = vadd.f32 %v2875, %v2387
      %v3068 = vadd.f32 %v2880, %v2388
      %v3069 = vadd.f32 %v2883, %v2389
      %v3070 = vadd.f32 %v2888, %v2390
      %v3071 = vadd.f32 %v2891, %v2391
      %v3072 = vadd.f32 %v2896, %v2392
      %v3073 = vadd.f32 %v2899, %v2393
      %v3074 = vadd.f32 %v2904, %v2394
      %v3075 = vadd.f32 %v2907, %v2395
      %v3076 = vadd.f32 %v2912, %v2396
      %v3077 = vadd.f32 %v2915, %v2397
      %v3078 = vadd.f32 %v2920, %v2398
      %v3079 = vadd.f32 %v2923, %v2399
      %v3080 = vadd.f32 %v2928, %v2400
      %v3081 = vadd.f32 %v2931, %v2401
      %v3082 = vadd.f32 %v2936, %v2402
      %v3083 = vadd.f32 %v2939, %v2403
      %v3084 = vadd.f32 %v2944, %v2404
      %v3085 = vadd.f32 %v2947, %v2405
      %v3086 = vadd.f32 %v2952, %v2406
      %v3087 = vadd.f32 %v2955, %v2407
      %v3088 = vadd.f32 %v2960, %v2408
      %v3089 = vadd.f32 %v2963, %v2409
      %v3090 = vadd.f32 %v2968, %v2410
      %v3091 = vadd.f32 %v2971, %v2411
      %v3092 = vadd.f32 %v2976, %v2412
      %v3093 = vadd.f32 %v2979, %v2413
      %v3094 = vadd.f32 %v2984, %v2414
      %v3095 = vadd.f32 %v2987, %v2415
      %v3096 = vadd.f32 %v2992, %v2416
      %v3097 = vadd.f32 %v2995, %v2417
      %v3098 = vadd.f32 %v3000, %v2418
      %v3099 = vadd.f32 %v3003, %v2419
      %v3100 = vadd.f32 %v3008, %v2420
      %v3101 = vadd.f32 %v3011, %v2421
      %v3102 = vadd.f32 %v3016, %v2422
      %v3103 = vadd.f32 %v3019, %v2423
      %v3104 = vadd.f32 %v3024, %v2424
      %v3105 = vadd.f32 %v3027, %v2425
      %v3106 = vadd.f32 %v3032, %v2426
      %v3107 = vadd.f32 %v3035, %v2427
      %v3108 = vadd.f32 %v3040, %v2428
      %v3109 = vadd.f32 %v3043, %v2429
      %3110 = vst [vmem:[#allocation8] sm:$0xff] %v3046
      %3111 = vst [vmem:[#allocation8 + $0x8] sm:$0xff] %v3047
      %3112 = vst [vmem:[#allocation8 + $0x10] sm:$0xff] %v3048
      %3113 = vst [vmem:[#allocation8 + $0x18] sm:$0xff] %v3049
      %3114 = vst [vmem:[#allocation8 + $0x20] sm:$0xff] %v3050
      %3115 = vst [vmem:[#allocation8 + $0x28] sm:$0xff] %v3051
      %3116 = vst [vmem:[#allocation8 + $0x30] sm:$0xff] %v3052
      %3117 = vst [vmem:[#allocation8 + $0x38] sm:$0xff] %v3053
      %3118 = vst [vmem:[#allocation8 + $0x40] sm:$0xff] %v3054
      %3119 = vst [vmem:[#allocation8 + $0x48] sm:$0xff] %v3055
      %3120 = vst [vmem:[#allocation8 + $0x50] sm:$0xff] %v3056
      %3121 = vst [vmem:[#allocation8 + $0x58] sm:$0xff] %v3057
      %3122 = vst [vmem:[#allocation8 + $0x60] sm:$0xff] %v3058
      %3123 = vst [vmem:[#allocation8 + $0x68] sm:$0xff] %v3059
      %3124 = vst [vmem:[#allocation8 + $0x70] sm:$0xff] %v3060
      %3125 = vst [vmem:[#allocation8 + $0x78] sm:$0xff] %v3061
      %3126 = vst [vmem:[#allocation8 + $0x80] sm:$0xff] %v3062
      %3127 = vst [vmem:[#allocation8 + $0x88] sm:$0xff] %v3063
      %3128 = vst [vmem:[#allocation8 + $0x90] sm:$0xff] %v3064
      %3129 = vst [vmem:[#allocation8 + $0x98] sm:$0xff] %v3065
      %3130 = vst [vmem:[#allocation8 + $0xa0] sm:$0xff] %v3066
      %3131 = vst [vmem:[#allocation8 + $0xa8] sm:$0xff] %v3067
      %3132 = vst [vmem:[#allocation8 + $0xb0] sm:$0xff] %v3068
      %3133 = vst [vmem:[#allocation8 + $0xb8] sm:$0xff] %v3069
      %3134 = vst [vmem:[#allocation8 + $0xc0] sm:$0xff] %v3070
      %3135 = vst [vmem:[#allocation8 + $0xc8] sm:$0xff] %v3071
      %3136 = vst [vmem:[#allocation8 + $0xd0] sm:$0xff] %v3072
      %3137 = vst [vmem:[#allocation8 + $0xd8] sm:$0xff] %v3073
      %3138 = vst [vmem:[#allocation8 + $0xe0] sm:$0xff] %v3074
      %3139 = vst [vmem:[#allocation8 + $0xe8] sm:$0xff] %v3075
      %3140 = vst [vmem:[#allocation8 + $0xf0] sm:$0xff] %v3076
      %3141 = vst [vmem:[#allocation8 + $0xf8] sm:$0xff] %v3077
      %3142 = vst [vmem:[#allocation8 + $0x100] sm:$0xff] %v3078
      %3143 = vst [vmem:[#allocation8 + $0x108] sm:$0xff] %v3079
      %3144 = vst [vmem:[#allocation8 + $0x110] sm:$0xff] %v3080
      %3145 = vst [vmem:[#allocation8 + $0x118] sm:$0xff] %v3081
      %3146 = vst [vmem:[#allocation8 + $0x120] sm:$0xff] %v3082
      %3147 = vst [vmem:[#allocation8 + $0x128] sm:$0xff] %v3083
      %3148 = vst [vmem:[#allocation8 + $0x130] sm:$0xff] %v3084
      %3149 = vst [vmem:[#allocation8 + $0x138] sm:$0xff] %v3085
      %3150 = vst [vmem:[#allocation8 + $0x140] sm:$0xff] %v3086
      %3151 = vst [vmem:[#allocation8 + $0x148] sm:$0xff] %v3087
      %3152 = vst [vmem:[#allocation8 + $0x150] sm:$0xff] %v3088
      %3153 = vst [vmem:[#allocation8 + $0x158] sm:$0xff] %v3089
      %3154 = vst [vmem:[#allocation8 + $0x160] sm:$0xff] %v3090
      %3155 = vst [vmem:[#allocation8 + $0x168] sm:$0xff] %v3091
      %3156 = vst [vmem:[#allocation8 + $0x170] sm:$0xff] %v3092
      %3157 = vst [vmem:[#allocation8 + $0x178] sm:$0xff] %v3093
      %3158 = vst [vmem:[#allocation8 + $0x180] sm:$0xff] %v3094
      %3159 = vst [vmem:[#allocation8 + $0x188] sm:$0xff] %v3095
      %3160 = vst [vmem:[#allocation8 + $0x190] sm:$0xff] %v3096
      %3161 = vst [vmem:[#allocation8 + $0x198] sm:$0xff] %v3097
      %3162 = vst [vmem:[#allocation8 + $0x1a0] sm:$0xff] %v3098
      %3163 = vst [vmem:[#allocation8 + $0x1a8] sm:$0xff] %v3099
      %3164 = vst [vmem:[#allocation8 + $0x1b0] sm:$0xff] %v3100
      %3165 = vst [vmem:[#allocation8 + $0x1b8] sm:$0xff] %v3101
      %3166 = vst [vmem:[#allocation8 + $0x1c0] sm:$0xff] %v3102
      %3167 = vst [vmem:[#allocation8 + $0x1c8] sm:$0xff] %v3103
      %3168 = vst [vmem:[#allocation8 + $0x1d0] sm:$0xff] %v3104
      %3169 = vst [vmem:[#allocation8 + $0x1d8] sm:$0xff] %v3105
      %3170 = vst [vmem:[#allocation8 + $0x1e0] sm:$0xff] %v3106
      %3171 = vst [vmem:[#allocation8 + $0x1e8] sm:$0xff] %v3107
      %3172 = vst [vmem:[#allocation8 + $0x1f0] sm:$0xff] %v3108
      %3173 = vst [vmem:[#allocation8 + $0x1f8] sm:$0xff] %v3109
    $region41: #{tpu_custom_call.1} parent=1 // pred_fallthru
      _
    // Predicated region
    $region42: #{tpu_custom_call.1} parent=1 // pred_check
      _
    $region43: #{tpu_custom_call.1} parent=1 // pred_check_branch
      %3175 = sbr.rel (0) target = $region45
    $region44: #{tpu_custom_call.1} parent=1 // pred_region
      %s3177 = ssub.s32 8192, 8192
      %3178 = vsyncadd [#allocation5], %s3177
      %s3179 = sshll.u32 [#allocation8], 4
      %s3180 = int_to_ptr.vmem [resolvable:$true] %s3179
      %3185 = dma.vmem_to_hbm [thread:$0]  %s3180, 8192, %s6, [#allocation5], 128, 128, 8
    $region45: #{tpu_custom_call.1} parent=1 // pred_fallthru
      _
    // Predicated region
    $region46: #{tpu_custom_call.1} parent=1 // pred_check
      _
    $region47: #{tpu_custom_call.1} parent=1 // pred_check_branch
      %3187 = sbr.rel (0) target = $region49
    $region48: #{tpu_custom_call.1} parent=1 // pred_region
      %3188 = dma.done [#allocation5], 8192
    $region49: #{tpu_custom_call.1} parent=1 // pred_fallthru
      _
    %3189 = vsyncpa [#allocation4], 1
    %3190 = vsyncpa [#allocation7], 1
    %3191 = vsyncpa [#allocation5], 1

</llo_original>
